<compile_context>
chip_gen: v7x
topology: tpu7x:2x2x1
jax: 0.10.0
libtpu: 0.0.40
codegen_flags: <defaults>
</compile_context>

<pallas_src>
import functools

import jax
import jax.numpy as jnp
from jax.experimental import pallas as pl
from jax.experimental.pallas import tpu as pltpu


def _make_kernel(num_layers: int, hidden_size: int, fuse_upper: bool):
    H = hidden_size

    def kernel(*refs):
        # refs layout:
        #   x (T,B,D) f32,
        #   wih_0 (D,4H) bf16, whh_0 (H,4H) bf16, b_0 (1,4H) f32,
        #   per upper layer l>=1:
        #     fused:   wcat_l (2H,4H) bf16, b_l (1,4H) f32
        #     unfused: wih_l (H,4H) bf16, whh_l (H,4H) bf16, b_l (1,4H) f32
        #   fc_w (H,1) bf16, fc_b (1,1) f32,
        #   out (B,1) f32
        x_ref = refs[0]
        wih0_ref, whh0_ref, b0_ref = refs[1], refs[2], refs[3]
        idx = 4
        upper = []
        for _ in range(num_layers - 1):
            n = 2 if fuse_upper else 3
            upper.append(tuple(refs[idx:idx + n]))
            idx += n
        fc_w_ref, fc_b_ref = refs[idx], refs[idx + 1]
        out_ref = refs[idx + 2]

        T, B, D = x_ref.shape

        # ---- hoisted layer-0 input projection (bias folded), off the critical
        # path; kept as values (no VMEM scratch round-trip).  For tiny D this
        # could also be done as D VPU broadcast-FMAs, but it runs once per call.
        x_flat = x_ref[...].reshape(T * B, D).astype(jnp.bfloat16)
        xproj = (jnp.dot(x_flat, wih0_ref[...],
                         preferred_element_type=jnp.float32)
                 + b0_ref[...])                       # (T*B, 4H) f32

        # Hoist all weight loads out of the recurrence.
        whh0 = whh0_ref[...]                          # bf16
        upper_w = [tuple(r[...] for r in tup) for tup in upper]
        fc_w = fc_w_ref[...]
        fc_b = fc_b_ref[...]

        def lstm_cell(gates, c_prev):
            # gate column order is [i, f, o, g]:
            # sigmoid only on the first 3H lanes, tanh only on the last H.
            sig = jax.nn.sigmoid(gates[:, :3 * H])
            g_g = jnp.tanh(gates[:, 3 * H:4 * H])
            i_g = sig[:, 0:H]
            f_g = sig[:, H:2 * H]
            o_g = sig[:, 2 * H:3 * H]
            c_new = f_g * c_prev + i_g * g_g
            h_new = o_g * jnp.tanh(c_new)
            return h_new, c_new

        hs = [jnp.zeros((B, H), jnp.float32) for _ in range(num_layers)]
        cs = [jnp.zeros((B, H), jnp.float32) for _ in range(num_layers)]

        # Fully unrolled time loop (T is small); concrete t lets us statically
        # slice the hoisted projection.  The LLO scheduler is free to overlap
        # layer-0 step t+1 with layer-1 step t across the unrolled body.
        for t in range(T):
            # layer 0: input part precomputed; only the recurrent matmul remains.
            gates0 = xproj[t * B:(t + 1) * B, :] + jnp.dot(
                hs[0].astype(jnp.bfloat16), whh0,
                preferred_element_type=jnp.float32)
            hs[0], cs[0] = lstm_cell(gates0, cs[0])
            layer_in = hs[0]

            for l in range(1, num_layers):
                if fuse_upper:
                    wcat, b_l = upper_w[l - 1]
                    inp = jnp.concatenate([layer_in, hs[l]],
                                          axis=1).astype(jnp.bfloat16)
                    gates = jnp.dot(inp, wcat,
                                    preferred_element_type=jnp.float32) + b_l
                else:
                    # small H: two K=H dots instead of a lane-splice concat.
                    wih_l, whh_l, b_l = upper_w[l - 1]
                    gates = (jnp.dot(layer_in.astype(jnp.bfloat16), wih_l,
                                     preferred_element_type=jnp.float32)
                             + jnp.dot(hs[l].astype(jnp.bfloat16), whh_l,
                                       preferred_element_type=jnp.float32)
                             + b_l)
                hs[l], cs[l] = lstm_cell(gates, cs[l])
                layer_in = hs[l]

        # last-step FC + sigmoid head.
        logits = jnp.dot(hs[-1].astype(jnp.bfloat16), fc_w,
                         preferred_element_type=jnp.float32) + fc_b
        out_ref[...] = jax.nn.sigmoid(logits).astype(out_ref.dtype)

    return kernel


def subscription_lstm_forward(x, params, *, num_layers: int, hidden_size: int):
    """x: (B, T, D) float32.  params: dict of pre-transposed f32 weights in
    PyTorch gate order [i, f, g, o]."""
    B, T, D = x.shape
    H = hidden_size

    # Pad batch to the f32 sublane tile (8) so vregs / MXU LHS rows are full.
    B_pad = max(8, ((B + 7) // 8) * 8)
    if B_pad != B:
        x = jnp.pad(x, ((0, B_pad - B), (0, 0), (0, 0)))
    # Time-major so per-step slicing is a leading-axis (untiled) index.
    x_tbd = jnp.transpose(x, (1, 0, 2))  # (T, B_pad, D)

    def permute_gates(w):
        # [i, f, g, o] -> [i, f, o, g] along the 4H axis (host-side, free).
        return jnp.concatenate(
            [w[..., 0:2 * H], w[..., 3 * H:4 * H], w[..., 2 * H:3 * H]], axis=-1)

    fuse_upper = (H % 128 == 0)

    inputs = [
        x_tbd,
        permute_gates(params["wih_0"]).astype(jnp.bfloat16),
        permute_gates(params["whh_0"]).astype(jnp.bfloat16),
        permute_gates(params["b_0"]),                     # bias stays f32
    ]
    for l in range(1, num_layers):
        wih = permute_gates(params[f"wih_{l}"])
        whh = permute_gates(params[f"whh_{l}"])
        b_l = permute_gates(params[f"b_{l}"])
        if fuse_upper:
            inputs += [jnp.concatenate([wih, whh], axis=0).astype(jnp.bfloat16),
                       b_l]
        else:
            inputs += [wih.astype(jnp.bfloat16), whh.astype(jnp.bfloat16), b_l]
    inputs += [params["fc_w"].astype(jnp.bfloat16), params["fc_b"]]

    vmem_spec = pl.BlockSpec(memory_space=pltpu.MemorySpace.VMEM)

    # VMEM limit sized to whole-array residency (single-buffered, no grid) with
    # headroom; never below the per-chip defaults, capped below v7x physical.
    resident = sum(int(a.size) * a.dtype.itemsize for a in inputs) + B_pad * 4
    vmem_limit = min(max(2 * resident + (8 << 20), 32 << 20), 64 << 20)

    out = pl.pallas_call(
        _make_kernel(num_layers, H, fuse_upper),
        out_shape=jax.ShapeDtypeStruct((B_pad, 1), jnp.float32),
        in_specs=[vmem_spec] * len(inputs),
        out_specs=vmem_spec,
        compiler_params=pltpu.CompilerParams(vmem_limit_bytes=vmem_limit),
    )(*inputs)
    return out[:B]


def init_params(key, input_size, hidden_size, num_layers):
    """Deterministic init matching PyTorch LSTM shapes (weights pre-transposed,
    gate order [i, f, g, o])."""
    H = hidden_size
    params = {}
    bound = 1.0 / jnp.sqrt(jnp.float32(H))
    for l in range(num_layers):
        d_in = input_size if l == 0 else H
        key, k1, k2, k3, k4 = jax.random.split(key, 5)
        params[f"wih_{l}"] = jax.random.uniform(k1, (d_in, 4 * H), jnp.float32,
                                                -bound, bound)
        params[f"whh_{l}"] = jax.random.uniform(k2, (H, 4 * H), jnp.float32,
                                                -bound, bound)
        b_ih = jax.random.uniform(k3, (4 * H,), jnp.float32, -bound, bound)
        b_hh = jax.random.uniform(k4, (4 * H,), jnp.float32, -bound, bound)
        params[f"b_{l}"] = (b_ih + b_hh).reshape(1, 4 * H)
    key, k5, k6 = jax.random.split(key, 3)
    params["fc_w"] = jax.random.uniform(k5, (H, 1), jnp.float32, -bound, bound)
    params["fc_b"] = jax.random.uniform(k6, (1, 1), jnp.float32, -bound, bound)
    return params


def reference_forward(x, params, *, num_layers, hidden_size):
    """Pure-JAX f32 reference (same math as torch.nn.LSTM + Linear + Sigmoid)."""
    B, T, D = x.shape
    H = hidden_size
    h = [jnp.zeros((B, H), jnp.float32) for _ in range(num_layers)]
    c = [jnp.zeros((B, H), jnp.float32) for _ in range(num_layers)]
    for t in range(T):
        inp = x[:, t, :]
        for l in range(num_layers):
            gates = (inp @ params[f"wih_{l}"] + h[l] @ params[f"whh_{l}"]
                     + params[f"b_{l}"])
            i_g = jax.nn.sigmoid(gates[:, 0:H])
            f_g = jax.nn.sigmoid(gates[:, H:2 * H])
            g_g = jnp.tanh(gates[:, 2 * H:3 * H])
            o_g = jax.nn.sigmoid(gates[:, 3 * H:4 * H])
            c[l] = f_g * c[l] + i_g * g_g
            h[l] = o_g * jnp.tanh(c[l])
            inp = h[l]
    logits = h[-1] @ params["fc_w"] + params["fc_b"]
    return jax.nn.sigmoid(logits)


if __name__ == "__main__":
    B, T = 2, 8
    INPUT_SIZE, HIDDEN_SIZE, NUM_LAYERS = 4, 32, 2

    key = jax.random.PRNGKey(0)
    key, kx, kp = jax.random.split(key, 3)
    x = jax.random.normal(kx, (B, T, INPUT_SIZE), jnp.float32)
    params = init_params(kp, INPUT_SIZE, HIDDEN_SIZE, NUM_LAYERS)

    fwd = functools.partial(subscription_lstm_forward,
                            num_layers=NUM_LAYERS, hidden_size=HIDDEN_SIZE)
    out = jax.block_until_ready(fwd(x, params))

    ref = reference_forward(x, params, num_layers=NUM_LAYERS,
                            hidden_size=HIDDEN_SIZE)
    assert out.shape == (B, 1)
    # Tolerance relaxed for bf16 MXU operands (expected precision loss, not a bug).
    max_err = float(jnp.max(jnp.abs(out - ref)))
    assert jnp.allclose(out, ref, atol=2e-2, rtol=2e-2), (out, ref, max_err)

    print("KERNEL_OK")
</pallas_src>

<mosaic_0001>
module attributes {stable_mosaic.version = 11 : i64} {
  func.func @kernel(%arg0: memref<8x8x4xf32, #tpu.memory_space<vmem>>, %arg1: memref<4x128xbf16, #tpu.memory_space<vmem>>, %arg2: memref<32x128xbf16, #tpu.memory_space<vmem>>, %arg3: memref<1x128xf32, #tpu.memory_space<vmem>>, %arg4: memref<32x128xbf16, #tpu.memory_space<vmem>>, %arg5: memref<32x128xbf16, #tpu.memory_space<vmem>>, %arg6: memref<1x128xf32, #tpu.memory_space<vmem>>, %arg7: memref<32x1xbf16, #tpu.memory_space<vmem>>, %arg8: memref<1x1xf32, #tpu.memory_space<vmem>>, %arg9: memref<8x1xf32, #tpu.memory_space<vmem>>) attributes {dimension_semantics = [], scalar_prefetch = 0 : i64, scratch_operands = 0 : i64, tpu.core_type = #tpu.core_type<tc>} {
    %c0 = arith.constant 0 : index
    %c0_0 = arith.constant 0 : index
    %c0_1 = arith.constant 0 : index
    %0 = vector.load %arg0[%c0, %c0_0, %c0_1] : memref<8x8x4xf32, #tpu.memory_space<vmem>>, vector<8x8x4xf32>
    %1 = vector.shape_cast %0 : vector<8x8x4xf32> to vector<64x4xf32>
    %2 = arith.truncf %1 : vector<64x4xf32> to vector<64x4xbf16>
    %c0_2 = arith.constant 0 : index
    %c0_3 = arith.constant 0 : index
    %3 = vector.load %arg1[%c0_2, %c0_3] : memref<4x128xbf16, #tpu.memory_space<vmem>>, vector<4x128xbf16>
    %cst = arith.constant dense<0.000000e+00> : vector<64x128xf32>
    %4 = tpu.matmul %2, %3, %cst {dimension_numbers = #tpu.dot_dimension_numbers<[1], [0], [0], [1], [0, 0, 1, 1], [], []>} : vector<64x4xbf16>, vector<4x128xbf16>, vector<64x128xf32> -> vector<64x128xf32>
    %c0_4 = arith.constant 0 : index
    %c0_5 = arith.constant 0 : index
    %5 = vector.load %arg3[%c0_4, %c0_5] : memref<1x128xf32, #tpu.memory_space<vmem>>, vector<1x128xf32>
    %6 = vector.broadcast %5 : vector<1x128xf32> to vector<64x128xf32>
    %7 = arith.addf %4, %6 : vector<64x128xf32>
    %c0_6 = arith.constant 0 : index
    %c0_7 = arith.constant 0 : index
    %8 = vector.load %arg2[%c0_6, %c0_7] : memref<32x128xbf16, #tpu.memory_space<vmem>>, vector<32x128xbf16>
    %c0_8 = arith.constant 0 : index
    %c0_9 = arith.constant 0 : index
    %9 = vector.load %arg4[%c0_8, %c0_9] : memref<32x128xbf16, #tpu.memory_space<vmem>>, vector<32x128xbf16>
    %c0_10 = arith.constant 0 : index
    %c0_11 = arith.constant 0 : index
    %10 = vector.load %arg5[%c0_10, %c0_11] : memref<32x128xbf16, #tpu.memory_space<vmem>>, vector<32x128xbf16>
    %c0_12 = arith.constant 0 : index
    %c0_13 = arith.constant 0 : index
    %11 = vector.load %arg6[%c0_12, %c0_13] : memref<1x128xf32, #tpu.memory_space<vmem>>, vector<1x128xf32>
    %c0_14 = arith.constant 0 : index
    %c0_15 = arith.constant 0 : index
    %12 = vector.load %arg7[%c0_14, %c0_15] : memref<32x1xbf16, #tpu.memory_space<vmem>>, vector<32x1xbf16>
    %c0_16 = arith.constant 0 : index
    %c0_17 = arith.constant 0 : index
    %13 = vector.load %arg8[%c0_16, %c0_17] : memref<1x1xf32, #tpu.memory_space<vmem>>, vector<1x1xf32>
    %cst_18 = arith.constant 0.000000e+00 : f32
    %14 = vector.broadcast %cst_18 : f32 to vector<8x32xf32>
    %cst_19 = arith.constant 0.000000e+00 : f32
    %15 = vector.broadcast %cst_19 : f32 to vector<8x32xf32>
    %cst_20 = arith.constant 0.000000e+00 : f32
    %16 = vector.broadcast %cst_20 : f32 to vector<8x32xf32>
    %cst_21 = arith.constant 0.000000e+00 : f32
    %17 = vector.broadcast %cst_21 : f32 to vector<8x32xf32>
    %18 = vector.extract_strided_slice %7 {offsets = [0, 0], sizes = [8, 128], strides = [1, 1]} : vector<64x128xf32> to vector<8x128xf32>
    %19 = arith.truncf %14 : vector<8x32xf32> to vector<8x32xbf16>
    %cst_22 = arith.constant dense<0.000000e+00> : vector<8x128xf32>
    %20 = tpu.matmul %19, %8, %cst_22 {dimension_numbers = #tpu.dot_dimension_numbers<[1], [0], [0], [1], [0, 0, 1, 1], [], []>} : vector<8x32xbf16>, vector<32x128xbf16>, vector<8x128xf32> -> vector<8x128xf32>
    %21 = arith.addf %18, %20 : vector<8x128xf32>
    %22 = vector.extract_strided_slice %21 {offsets = [0, 0], sizes = [8, 96], strides = [1, 1]} : vector<8x128xf32> to vector<8x96xf32>
    %23 = arith.negf %22 : vector<8x96xf32>
    %24 = math.exp %23 : vector<8x96xf32>
    %cst_23 = arith.constant 1.000000e+00 : f32
    %25 = vector.broadcast %cst_23 : f32 to vector<8x96xf32>
    %26 = arith.addf %25, %24 : vector<8x96xf32>
    %27 = arith.divf %25, %26 : vector<8x96xf32>
    %28 = vector.extract_strided_slice %21 {offsets = [0, 96], sizes = [8, 32], strides = [1, 1]} : vector<8x128xf32> to vector<8x32xf32>
    %29 = math.tanh %28 : vector<8x32xf32>
    %30 = vector.extract_strided_slice %27 {offsets = [0, 0], sizes = [8, 32], strides = [1, 1]} : vector<8x96xf32> to vector<8x32xf32>
    %31 = vector.extract_strided_slice %27 {offsets = [0, 32], sizes = [8, 32], strides = [1, 1]} : vector<8x96xf32> to vector<8x32xf32>
    %32 = vector.extract_strided_slice %27 {offsets = [0, 64], sizes = [8, 32], strides = [1, 1]} : vector<8x96xf32> to vector<8x32xf32>
    %33 = arith.mulf %31, %16 : vector<8x32xf32>
    %34 = arith.mulf %30, %29 : vector<8x32xf32>
    %35 = arith.addf %33, %34 : vector<8x32xf32>
    %36 = math.tanh %35 : vector<8x32xf32>
    %37 = arith.mulf %32, %36 : vector<8x32xf32>
    %38 = arith.truncf %37 : vector<8x32xf32> to vector<8x32xbf16>
    %cst_24 = arith.constant dense<0.000000e+00> : vector<8x128xf32>
    %39 = tpu.matmul %38, %9, %cst_24 {dimension_numbers = #tpu.dot_dimension_numbers<[1], [0], [0], [1], [0, 0, 1, 1], [], []>} : vector<8x32xbf16>, vector<32x128xbf16>, vector<8x128xf32> -> vector<8x128xf32>
    %40 = arith.truncf %15 : vector<8x32xf32> to vector<8x32xbf16>
    %cst_25 = arith.constant dense<0.000000e+00> : vector<8x128xf32>
    %41 = tpu.matmul %40, %10, %cst_25 {dimension_numbers = #tpu.dot_dimension_numbers<[1], [0], [0], [1], [0, 0, 1, 1], [], []>} : vector<8x32xbf16>, vector<32x128xbf16>, vector<8x128xf32> -> vector<8x128xf32>
    %42 = arith.addf %39, %41 : vector<8x128xf32>
    %43 = vector.broadcast %11 : vector<1x128xf32> to vector<8x128xf32>
    %44 = arith.addf %42, %43 : vector<8x128xf32>
    %45 = vector.extract_strided_slice %44 {offsets = [0, 0], sizes = [8, 96], strides = [1, 1]} : vector<8x128xf32> to vector<8x96xf32>
    %46 = arith.negf %45 : vector<8x96xf32>
    %47 = math.exp %46 : vector<8x96xf32>
    %cst_26 = arith.constant 1.000000e+00 : f32
    %48 = vector.broadcast %cst_26 : f32 to vector<8x96xf32>
    %49 = arith.addf %48, %47 : vector<8x96xf32>
    %50 = arith.divf %48, %49 : vector<8x96xf32>
    %51 = vector.extract_strided_slice %44 {offsets = [0, 96], sizes = [8, 32], strides = [1, 1]} : vector<8x128xf32> to vector<8x32xf32>
    %52 = math.tanh %51 : vector<8x32xf32>
    %53 = vector.extract_strided_slice %50 {offsets = [0, 0], sizes = [8, 32], strides = [1, 1]} : vector<8x96xf32> to vector<8x32xf32>
    %54 = vector.extract_strided_slice %50 {offsets = [0, 32], sizes = [8, 32], strides = [1, 1]} : vector<8x96xf32> to vector<8x32xf32>
    %55 = vector.extract_strided_slice %50 {offsets = [0, 64], sizes = [8, 32], strides = [1, 1]} : vector<8x96xf32> to vector<8x32xf32>
    %56 = arith.mulf %54, %17 : vector<8x32xf32>
    %57 = arith.mulf %53, %52 : vector<8x32xf32>
    %58 = arith.addf %56, %57 : vector<8x32xf32>
    %59 = math.tanh %58 : vector<8x32xf32>
    %60 = arith.mulf %55, %59 : vector<8x32xf32>
    %61 = vector.extract_strided_slice %7 {offsets = [8, 0], sizes = [8, 128], strides = [1, 1]} : vector<64x128xf32> to vector<8x128xf32>
    %62 = arith.truncf %37 : vector<8x32xf32> to vector<8x32xbf16>
    %cst_27 = arith.constant dense<0.000000e+00> : vector<8x128xf32>
    %63 = tpu.matmul %62, %8, %cst_27 {dimension_numbers = #tpu.dot_dimension_numbers<[1], [0], [0], [1], [0, 0, 1, 1], [], []>} : vector<8x32xbf16>, vector<32x128xbf16>, vector<8x128xf32> -> vector<8x128xf32>
    %64 = arith.addf %61, %63 : vector<8x128xf32>
    %65 = vector.extract_strided_slice %64 {offsets = [0, 0], sizes = [8, 96], strides = [1, 1]} : vector<8x128xf32> to vector<8x96xf32>
    %66 = arith.negf %65 : vector<8x96xf32>
    %67 = math.exp %66 : vector<8x96xf32>
    %cst_28 = arith.constant 1.000000e+00 : f32
    %68 = vector.broadcast %cst_28 : f32 to vector<8x96xf32>
    %69 = arith.addf %68, %67 : vector<8x96xf32>
    %70 = arith.divf %68, %69 : vector<8x96xf32>
    %71 = vector.extract_strided_slice %64 {offsets = [0, 96], sizes = [8, 32], strides = [1, 1]} : vector<8x128xf32> to vector<8x32xf32>
    %72 = math.tanh %71 : vector<8x32xf32>
    %73 = vector.extract_strided_slice %70 {offsets = [0, 0], sizes = [8, 32], strides = [1, 1]} : vector<8x96xf32> to vector<8x32xf32>
    %74 = vector.extract_strided_slice %70 {offsets = [0, 32], sizes = [8, 32], strides = [1, 1]} : vector<8x96xf32> to vector<8x32xf32>
    %75 = vector.extract_strided_slice %70 {offsets = [0, 64], sizes = [8, 32], strides = [1, 1]} : vector<8x96xf32> to vector<8x32xf32>
    %76 = arith.mulf %74, %35 : vector<8x32xf32>
    %77 = arith.mulf %73, %72 : vector<8x32xf32>
    %78 = arith.addf %76, %77 : vector<8x32xf32>
    %79 = math.tanh %78 : vector<8x32xf32>
    %80 = arith.mulf %75, %79 : vector<8x32xf32>
    %81 = arith.truncf %80 : vector<8x32xf32> to vector<8x32xbf16>
    %cst_29 = arith.constant dense<0.000000e+00> : vector<8x128xf32>
    %82 = tpu.matmul %81, %9, %cst_29 {dimension_numbers = #tpu.dot_dimension_numbers<[1], [0], [0], [1], [0, 0, 1, 1], [], []>} : vector<8x32xbf16>, vector<32x128xbf16>, vector<8x128xf32> -> vector<8x128xf32>
    %83 = arith.truncf %60 : vector<8x32xf32> to vector<8x32xbf16>
    %cst_30 = arith.constant dense<0.000000e+00> : vector<8x128xf32>
    %84 = tpu.matmul %83, %10, %cst_30 {dimension_numbers = #tpu.dot_dimension_numbers<[1], [0], [0], [1], [0, 0, 1, 1], [], []>} : vector<8x32xbf16>, vector<32x128xbf16>, vector<8x128xf32> -> vector<8x128xf32>
    %85 = arith.addf %82, %84 : vector<8x128xf32>
    %86 = vector.broadcast %11 : vector<1x128xf32> to vector<8x128xf32>
    %87 = arith.addf %85, %86 : vector<8x128xf32>
    %88 = vector.extract_strided_slice %87 {offsets = [0, 0], sizes = [8, 96], strides = [1, 1]} : vector<8x128xf32> to vector<8x96xf32>
    %89 = arith.negf %88 : vector<8x96xf32>
    %90 = math.exp %89 : vector<8x96xf32>
    %cst_31 = arith.constant 1.000000e+00 : f32
    %91 = vector.broadcast %cst_31 : f32 to vector<8x96xf32>
    %92 = arith.addf %91, %90 : vector<8x96xf32>
    %93 = arith.divf %91, %92 : vector<8x96xf32>
    %94 = vector.extract_strided_slice %87 {offsets = [0, 96], sizes = [8, 32], strides = [1, 1]} : vector<8x128xf32> to vector<8x32xf32>
    %95 = math.tanh %94 : vector<8x32xf32>
    %96 = vector.extract_strided_slice %93 {offsets = [0, 0], sizes = [8, 32], strides = [1, 1]} : vector<8x96xf32> to vector<8x32xf32>
    %97 = vector.extract_strided_slice %93 {offsets = [0, 32], sizes = [8, 32], strides = [1, 1]} : vector<8x96xf32> to vector<8x32xf32>
    %98 = vector.extract_strided_slice %93 {offsets = [0, 64], sizes = [8, 32], strides = [1, 1]} : vector<8x96xf32> to vector<8x32xf32>
    %99 = arith.mulf %97, %58 : vector<8x32xf32>
    %100 = arith.mulf %96, %95 : vector<8x32xf32>
    %101 = arith.addf %99, %100 : vector<8x32xf32>
    %102 = math.tanh %101 : vector<8x32xf32>
    %103 = arith.mulf %98, %102 : vector<8x32xf32>
    %104 = vector.extract_strided_slice %7 {offsets = [16, 0], sizes = [8, 128], strides = [1, 1]} : vector<64x128xf32> to vector<8x128xf32>
    %105 = arith.truncf %80 : vector<8x32xf32> to vector<8x32xbf16>
    %cst_32 = arith.constant dense<0.000000e+00> : vector<8x128xf32>
    %106 = tpu.matmul %105, %8, %cst_32 {dimension_numbers = #tpu.dot_dimension_numbers<[1], [0], [0], [1], [0, 0, 1, 1], [], []>} : vector<8x32xbf16>, vector<32x128xbf16>, vector<8x128xf32> -> vector<8x128xf32>
    %107 = arith.addf %104, %106 : vector<8x128xf32>
    %108 = vector.extract_strided_slice %107 {offsets = [0, 0], sizes = [8, 96], strides = [1, 1]} : vector<8x128xf32> to vector<8x96xf32>
    %109 = arith.negf %108 : vector<8x96xf32>
    %110 = math.exp %109 : vector<8x96xf32>
    %cst_33 = arith.constant 1.000000e+00 : f32
    %111 = vector.broadcast %cst_33 : f32 to vector<8x96xf32>
    %112 = arith.addf %111, %110 : vector<8x96xf32>
    %113 = arith.divf %111, %112 : vector<8x96xf32>
    %114 = vector.extract_strided_slice %107 {offsets = [0, 96], sizes = [8, 32], strides = [1, 1]} : vector<8x128xf32> to vector<8x32xf32>
    %115 = math.tanh %114 : vector<8x32xf32>
    %116 = vector.extract_strided_slice %113 {offsets = [0, 0], sizes = [8, 32], strides = [1, 1]} : vector<8x96xf32> to vector<8x32xf32>
    %117 = vector.extract_strided_slice %113 {offsets = [0, 32], sizes = [8, 32], strides = [1, 1]} : vector<8x96xf32> to vector<8x32xf32>
    %118 = vector.extract_strided_slice %113 {offsets = [0, 64], sizes = [8, 32], strides = [1, 1]} : vector<8x96xf32> to vector<8x32xf32>
    %119 = arith.mulf %117, %78 : vector<8x32xf32>
    %120 = arith.mulf %116, %115 : vector<8x32xf32>
    %121 = arith.addf %119, %120 : vector<8x32xf32>
    %122 = math.tanh %121 : vector<8x32xf32>
    %123 = arith.mulf %118, %122 : vector<8x32xf32>
    %124 = arith.truncf %123 : vector<8x32xf32> to vector<8x32xbf16>
    %cst_34 = arith.constant dense<0.000000e+00> : vector<8x128xf32>
    %125 = tpu.matmul %124, %9, %cst_34 {dimension_numbers = #tpu.dot_dimension_numbers<[1], [0], [0], [1], [0, 0, 1, 1], [], []>} : vector<8x32xbf16>, vector<32x128xbf16>, vector<8x128xf32> -> vector<8x128xf32>
    %126 = arith.truncf %103 : vector<8x32xf32> to vector<8x32xbf16>
    %cst_35 = arith.constant dense<0.000000e+00> : vector<8x128xf32>
    %127 = tpu.matmul %126, %10, %cst_35 {dimension_numbers = #tpu.dot_dimension_numbers<[1], [0], [0], [1], [0, 0, 1, 1], [], []>} : vector<8x32xbf16>, vector<32x128xbf16>, vector<8x128xf32> -> vector<8x128xf32>
    %128 = arith.addf %125, %127 : vector<8x128xf32>
    %129 = vector.broadcast %11 : vector<1x128xf32> to vector<8x128xf32>
    %130 = arith.addf %128, %129 : vector<8x128xf32>
    %131 = vector.extract_strided_slice %130 {offsets = [0, 0], sizes = [8, 96], strides = [1, 1]} : vector<8x128xf32> to vector<8x96xf32>
    %132 = arith.negf %131 : vector<8x96xf32>
    %133 = math.exp %132 : vector<8x96xf32>
    %cst_36 = arith.constant 1.000000e+00 : f32
    %134 = vector.broadcast %cst_36 : f32 to vector<8x96xf32>
    %135 = arith.addf %134, %133 : vector<8x96xf32>
    %136 = arith.divf %134, %135 : vector<8x96xf32>
    %137 = vector.extract_strided_slice %130 {offsets = [0, 96], sizes = [8, 32], strides = [1, 1]} : vector<8x128xf32> to vector<8x32xf32>
    %138 = math.tanh %137 : vector<8x32xf32>
    %139 = vector.extract_strided_slice %136 {offsets = [0, 0], sizes = [8, 32], strides = [1, 1]} : vector<8x96xf32> to vector<8x32xf32>
    %140 = vector.extract_strided_slice %136 {offsets = [0, 32], sizes = [8, 32], strides = [1, 1]} : vector<8x96xf32> to vector<8x32xf32>
    %141 = vector.extract_strided_slice %136 {offsets = [0, 64], sizes = [8, 32], strides = [1, 1]} : vector<8x96xf32> to vector<8x32xf32>
    %142 = arith.mulf %140, %101 : vector<8x32xf32>
    %143 = arith.mulf %139, %138 : vector<8x32xf32>
    %144 = arith.addf %142, %143 : vector<8x32xf32>
    %145 = math.tanh %144 : vector<8x32xf32>
    %146 = arith.mulf %141, %145 : vector<8x32xf32>
    %147 = vector.extract_strided_slice %7 {offsets = [24, 0], sizes = [8, 128], strides = [1, 1]} : vector<64x128xf32> to vector<8x128xf32>
    %148 = arith.truncf %123 : vector<8x32xf32> to vector<8x32xbf16>
    %cst_37 = arith.constant dense<0.000000e+00> : vector<8x128xf32>
    %149 = tpu.matmul %148, %8, %cst_37 {dimension_numbers = #tpu.dot_dimension_numbers<[1], [0], [0], [1], [0, 0, 1, 1], [], []>} : vector<8x32xbf16>, vector<32x128xbf16>, vector<8x128xf32> -> vector<8x128xf32>
    %150 = arith.addf %147, %149 : vector<8x128xf32>
    %151 = vector.extract_strided_slice %150 {offsets = [0, 0], sizes = [8, 96], strides = [1, 1]} : vector<8x128xf32> to vector<8x96xf32>
    %152 = arith.negf %151 : vector<8x96xf32>
    %153 = math.exp %152 : vector<8x96xf32>
    %cst_38 = arith.constant 1.000000e+00 : f32
    %154 = vector.broadcast %cst_38 : f32 to vector<8x96xf32>
    %155 = arith.addf %154, %153 : vector<8x96xf32>
    %156 = arith.divf %154, %155 : vector<8x96xf32>
    %157 = vector.extract_strided_slice %150 {offsets = [0, 96], sizes = [8, 32], strides = [1, 1]} : vector<8x128xf32> to vector<8x32xf32>
    %158 = math.tanh %157 : vector<8x32xf32>
    %159 = vector.extract_strided_slice %156 {offsets = [0, 0], sizes = [8, 32], strides = [1, 1]} : vector<8x96xf32> to vector<8x32xf32>
    %160 = vector.extract_strided_slice %156 {offsets = [0, 32], sizes = [8, 32], strides = [1, 1]} : vector<8x96xf32> to vector<8x32xf32>
    %161 = vector.extract_strided_slice %156 {offsets = [0, 64], sizes = [8, 32], strides = [1, 1]} : vector<8x96xf32> to vector<8x32xf32>
    %162 = arith.mulf %160, %121 : vector<8x32xf32>
    %163 = arith.mulf %159, %158 : vector<8x32xf32>
    %164 = arith.addf %162, %163 : vector<8x32xf32>
    %165 = math.tanh %164 : vector<8x32xf32>
    %166 = arith.mulf %161, %165 : vector<8x32xf32>
    %167 = arith.truncf %166 : vector<8x32xf32> to vector<8x32xbf16>
    %cst_39 = arith.constant dense<0.000000e+00> : vector<8x128xf32>
    %168 = tpu.matmul %167, %9, %cst_39 {dimension_numbers = #tpu.dot_dimension_numbers<[1], [0], [0], [1], [0, 0, 1, 1], [], []>} : vector<8x32xbf16>, vector<32x128xbf16>, vector<8x128xf32> -> vector<8x128xf32>
    %169 = arith.truncf %146 : vector<8x32xf32> to vector<8x32xbf16>
    %cst_40 = arith.constant dense<0.000000e+00> : vector<8x128xf32>
    %170 = tpu.matmul %169, %10, %cst_40 {dimension_numbers = #tpu.dot_dimension_numbers<[1], [0], [0], [1], [0, 0, 1, 1], [], []>} : vector<8x32xbf16>, vector<32x128xbf16>, vector<8x128xf32> -> vector<8x128xf32>
    %171 = arith.addf %168, %170 : vector<8x128xf32>
    %172 = vector.broadcast %11 : vector<1x128xf32> to vector<8x128xf32>
    %173 = arith.addf %171, %172 : vector<8x128xf32>
    %174 = vector.extract_strided_slice %173 {offsets = [0, 0], sizes = [8, 96], strides = [1, 1]} : vector<8x128xf32> to vector<8x96xf32>
    %175 = arith.negf %174 : vector<8x96xf32>
    %176 = math.exp %175 : vector<8x96xf32>
    %cst_41 = arith.constant 1.000000e+00 : f32
    %177 = vector.broadcast %cst_41 : f32 to vector<8x96xf32>
    %178 = arith.addf %177, %176 : vector<8x96xf32>
    %179 = arith.divf %177, %178 : vector<8x96xf32>
    %180 = vector.extract_strided_slice %173 {offsets = [0, 96], sizes = [8, 32], strides = [1, 1]} : vector<8x128xf32> to vector<8x32xf32>
    %181 = math.tanh %180 : vector<8x32xf32>
    %182 = vector.extract_strided_slice %179 {offsets = [0, 0], sizes = [8, 32], strides = [1, 1]} : vector<8x96xf32> to vector<8x32xf32>
    %183 = vector.extract_strided_slice %179 {offsets = [0, 32], sizes = [8, 32], strides = [1, 1]} : vector<8x96xf32> to vector<8x32xf32>
    %184 = vector.extract_strided_slice %179 {offsets = [0, 64], sizes = [8, 32], strides = [1, 1]} : vector<8x96xf32> to vector<8x32xf32>
    %185 = arith.mulf %183, %144 : vector<8x32xf32>
    %186 = arith.mulf %182, %181 : vector<8x32xf32>
    %187 = arith.addf %185, %186 : vector<8x32xf32>
    %188 = math.tanh %187 : vector<8x32xf32>
    %189 = arith.mulf %184, %188 : vector<8x32xf32>
    %190 = vector.extract_strided_slice %7 {offsets = [32, 0], sizes = [8, 128], strides = [1, 1]} : vector<64x128xf32> to vector<8x128xf32>
    %191 = arith.truncf %166 : vector<8x32xf32> to vector<8x32xbf16>
    %cst_42 = arith.constant dense<0.000000e+00> : vector<8x128xf32>
    %192 = tpu.matmul %191, %8, %cst_42 {dimension_numbers = #tpu.dot_dimension_numbers<[1], [0], [0], [1], [0, 0, 1, 1], [], []>} : vector<8x32xbf16>, vector<32x128xbf16>, vector<8x128xf32> -> vector<8x128xf32>
    %193 = arith.addf %190, %192 : vector<8x128xf32>
    %194 = vector.extract_strided_slice %193 {offsets = [0, 0], sizes = [8, 96], strides = [1, 1]} : vector<8x128xf32> to vector<8x96xf32>
    %195 = arith.negf %194 : vector<8x96xf32>
    %196 = math.exp %195 : vector<8x96xf32>
    %cst_43 = arith.constant 1.000000e+00 : f32
    %197 = vector.broadcast %cst_43 : f32 to vector<8x96xf32>
    %198 = arith.addf %197, %196 : vector<8x96xf32>
    %199 = arith.divf %197, %198 : vector<8x96xf32>
    %200 = vector.extract_strided_slice %193 {offsets = [0, 96], sizes = [8, 32], strides = [1, 1]} : vector<8x128xf32> to vector<8x32xf32>
    %201 = math.tanh %200 : vector<8x32xf32>
    %202 = vector.extract_strided_slice %199 {offsets = [0, 0], sizes = [8, 32], strides = [1, 1]} : vector<8x96xf32> to vector<8x32xf32>
    %203 = vector.extract_strided_slice %199 {offsets = [0, 32], sizes = [8, 32], strides = [1, 1]} : vector<8x96xf32> to vector<8x32xf32>
    %204 = vector.extract_strided_slice %199 {offsets = [0, 64], sizes = [8, 32], strides = [1, 1]} : vector<8x96xf32> to vector<8x32xf32>
    %205 = arith.mulf %203, %164 : vector<8x32xf32>
    %206 = arith.mulf %202, %201 : vector<8x32xf32>
    %207 = arith.addf %205, %206 : vector<8x32xf32>
    %208 = math.tanh %207 : vector<8x32xf32>
    %209 = arith.mulf %204, %208 : vector<8x32xf32>
    %210 = arith.truncf %209 : vector<8x32xf32> to vector<8x32xbf16>
    %cst_44 = arith.constant dense<0.000000e+00> : vector<8x128xf32>
    %211 = tpu.matmul %210, %9, %cst_44 {dimension_numbers = #tpu.dot_dimension_numbers<[1], [0], [0], [1], [0, 0, 1, 1], [], []>} : vector<8x32xbf16>, vector<32x128xbf16>, vector<8x128xf32> -> vector<8x128xf32>
    %212 = arith.truncf %189 : vector<8x32xf32> to vector<8x32xbf16>
    %cst_45 = arith.constant dense<0.000000e+00> : vector<8x128xf32>
    %213 = tpu.matmul %212, %10, %cst_45 {dimension_numbers = #tpu.dot_dimension_numbers<[1], [0], [0], [1], [0, 0, 1, 1], [], []>} : vector<8x32xbf16>, vector<32x128xbf16>, vector<8x128xf32> -> vector<8x128xf32>
    %214 = arith.addf %211, %213 : vector<8x128xf32>
    %215 = vector.broadcast %11 : vector<1x128xf32> to vector<8x128xf32>
    %216 = arith.addf %214, %215 : vector<8x128xf32>
    %217 = vector.extract_strided_slice %216 {offsets = [0, 0], sizes = [8, 96], strides = [1, 1]} : vector<8x128xf32> to vector<8x96xf32>
    %218 = arith.negf %217 : vector<8x96xf32>
    %219 = math.exp %218 : vector<8x96xf32>
    %cst_46 = arith.constant 1.000000e+00 : f32
    %220 = vector.broadcast %cst_46 : f32 to vector<8x96xf32>
    %221 = arith.addf %220, %219 : vector<8x96xf32>
    %222 = arith.divf %220, %221 : vector<8x96xf32>
    %223 = vector.extract_strided_slice %216 {offsets = [0, 96], sizes = [8, 32], strides = [1, 1]} : vector<8x128xf32> to vector<8x32xf32>
    %224 = math.tanh %223 : vector<8x32xf32>
    %225 = vector.extract_strided_slice %222 {offsets = [0, 0], sizes = [8, 32], strides = [1, 1]} : vector<8x96xf32> to vector<8x32xf32>
    %226 = vector.extract_strided_slice %222 {offsets = [0, 32], sizes = [8, 32], strides = [1, 1]} : vector<8x96xf32> to vector<8x32xf32>
    %227 = vector.extract_strided_slice %222 {offsets = [0, 64], sizes = [8, 32], strides = [1, 1]} : vector<8x96xf32> to vector<8x32xf32>
    %228 = arith.mulf %226, %187 : vector<8x32xf32>
    %229 = arith.mulf %225, %224 : vector<8x32xf32>
    %230 = arith.addf %228, %229 : vector<8x32xf32>
    %231 = math.tanh %230 : vector<8x32xf32>
    %232 = arith.mulf %227, %231 : vector<8x32xf32>
    %233 = vector.extract_strided_slice %7 {offsets = [40, 0], sizes = [8, 128], strides = [1, 1]} : vector<64x128xf32> to vector<8x128xf32>
    %234 = arith.truncf %209 : vector<8x32xf32> to vector<8x32xbf16>
    %cst_47 = arith.constant dense<0.000000e+00> : vector<8x128xf32>
    %235 = tpu.matmul %234, %8, %cst_47 {dimension_numbers = #tpu.dot_dimension_numbers<[1], [0], [0], [1], [0, 0, 1, 1], [], []>} : vector<8x32xbf16>, vector<32x128xbf16>, vector<8x128xf32> -> vector<8x128xf32>
    %236 = arith.addf %233, %235 : vector<8x128xf32>
    %237 = vector.extract_strided_slice %236 {offsets = [0, 0], sizes = [8, 96], strides = [1, 1]} : vector<8x128xf32> to vector<8x96xf32>
    %238 = arith.negf %237 : vector<8x96xf32>
    %239 = math.exp %238 : vector<8x96xf32>
    %cst_48 = arith.constant 1.000000e+00 : f32
    %240 = vector.broadcast %cst_48 : f32 to vector<8x96xf32>
    %241 = arith.addf %240, %239 : vector<8x96xf32>
    %242 = arith.divf %240, %241 : vector<8x96xf32>
    %243 = vector.extract_strided_slice %236 {offsets = [0, 96], sizes = [8, 32], strides = [1, 1]} : vector<8x128xf32> to vector<8x32xf32>
    %244 = math.tanh %243 : vector<8x32xf32>
    %245 = vector.extract_strided_slice %242 {offsets = [0, 0], sizes = [8, 32], strides = [1, 1]} : vector<8x96xf32> to vector<8x32xf32>
    %246 = vector.extract_strided_slice %242 {offsets = [0, 32], sizes = [8, 32], strides = [1, 1]} : vector<8x96xf32> to vector<8x32xf32>
    %247 = vector.extract_strided_slice %242 {offsets = [0, 64], sizes = [8, 32], strides = [1, 1]} : vector<8x96xf32> to vector<8x32xf32>
    %248 = arith.mulf %246, %207 : vector<8x32xf32>
    %249 = arith.mulf %245, %244 : vector<8x32xf32>
    %250 = arith.addf %248, %249 : vector<8x32xf32>
    %251 = math.tanh %250 : vector<8x32xf32>
    %252 = arith.mulf %247, %251 : vector<8x32xf32>
    %253 = arith.truncf %252 : vector<8x32xf32> to vector<8x32xbf16>
    %cst_49 = arith.constant dense<0.000000e+00> : vector<8x128xf32>
    %254 = tpu.matmul %253, %9, %cst_49 {dimension_numbers = #tpu.dot_dimension_numbers<[1], [0], [0], [1], [0, 0, 1, 1], [], []>} : vector<8x32xbf16>, vector<32x128xbf16>, vector<8x128xf32> -> vector<8x128xf32>
    %255 = arith.truncf %232 : vector<8x32xf32> to vector<8x32xbf16>
    %cst_50 = arith.constant dense<0.000000e+00> : vector<8x128xf32>
    %256 = tpu.matmul %255, %10, %cst_50 {dimension_numbers = #tpu.dot_dimension_numbers<[1], [0], [0], [1], [0, 0, 1, 1], [], []>} : vector<8x32xbf16>, vector<32x128xbf16>, vector<8x128xf32> -> vector<8x128xf32>
    %257 = arith.addf %254, %256 : vector<8x128xf32>
    %258 = vector.broadcast %11 : vector<1x128xf32> to vector<8x128xf32>
    %259 = arith.addf %257, %258 : vector<8x128xf32>
    %260 = vector.extract_strided_slice %259 {offsets = [0, 0], sizes = [8, 96], strides = [1, 1]} : vector<8x128xf32> to vector<8x96xf32>
    %261 = arith.negf %260 : vector<8x96xf32>
    %262 = math.exp %261 : vector<8x96xf32>
    %cst_51 = arith.constant 1.000000e+00 : f32
    %263 = vector.broadcast %cst_51 : f32 to vector<8x96xf32>
    %264 = arith.addf %263, %262 : vector<8x96xf32>
    %265 = arith.divf %263, %264 : vector<8x96xf32>
    %266 = vector.extract_strided_slice %259 {offsets = [0, 96], sizes = [8, 32], strides = [1, 1]} : vector<8x128xf32> to vector<8x32xf32>
    %267 = math.tanh %266 : vector<8x32xf32>
    %268 = vector.extract_strided_slice %265 {offsets = [0, 0], sizes = [8, 32], strides = [1, 1]} : vector<8x96xf32> to vector<8x32xf32>
    %269 = vector.extract_strided_slice %265 {offsets = [0, 32], sizes = [8, 32], strides = [1, 1]} : vector<8x96xf32> to vector<8x32xf32>
    %270 = vector.extract_strided_slice %265 {offsets = [0, 64], sizes = [8, 32], strides = [1, 1]} : vector<8x96xf32> to vector<8x32xf32>
    %271 = arith.mulf %269, %230 : vector<8x32xf32>
    %272 = arith.mulf %268, %267 : vector<8x32xf32>
    %273 = arith.addf %271, %272 : vector<8x32xf32>
    %274 = math.tanh %273 : vector<8x32xf32>
    %275 = arith.mulf %270, %274 : vector<8x32xf32>
    %276 = vector.extract_strided_slice %7 {offsets = [48, 0], sizes = [8, 128], strides = [1, 1]} : vector<64x128xf32> to vector<8x128xf32>
    %277 = arith.truncf %252 : vector<8x32xf32> to vector<8x32xbf16>
    %cst_52 = arith.constant dense<0.000000e+00> : vector<8x128xf32>
    %278 = tpu.matmul %277, %8, %cst_52 {dimension_numbers = #tpu.dot_dimension_numbers<[1], [0], [0], [1], [0, 0, 1, 1], [], []>} : vector<8x32xbf16>, vector<32x128xbf16>, vector<8x128xf32> -> vector<8x128xf32>
    %279 = arith.addf %276, %278 : vector<8x128xf32>
    %280 = vector.extract_strided_slice %279 {offsets = [0, 0], sizes = [8, 96], strides = [1, 1]} : vector<8x128xf32> to vector<8x96xf32>
    %281 = arith.negf %280 : vector<8x96xf32>
    %282 = math.exp %281 : vector<8x96xf32>
    %cst_53 = arith.constant 1.000000e+00 : f32
    %283 = vector.broadcast %cst_53 : f32 to vector<8x96xf32>
    %284 = arith.addf %283, %282 : vector<8x96xf32>
    %285 = arith.divf %283, %284 : vector<8x96xf32>
    %286 = vector.extract_strided_slice %279 {offsets = [0, 96], sizes = [8, 32], strides = [1, 1]} : vector<8x128xf32> to vector<8x32xf32>
    %287 = math.tanh %286 : vector<8x32xf32>
    %288 = vector.extract_strided_slice %285 {offsets = [0, 0], sizes = [8, 32], strides = [1, 1]} : vector<8x96xf32> to vector<8x32xf32>
    %289 = vector.extract_strided_slice %285 {offsets = [0, 32], sizes = [8, 32], strides = [1, 1]} : vector<8x96xf32> to vector<8x32xf32>
    %290 = vector.extract_strided_slice %285 {offsets = [0, 64], sizes = [8, 32], strides = [1, 1]} : vector<8x96xf32> to vector<8x32xf32>
    %291 = arith.mulf %289, %250 : vector<8x32xf32>
    %292 = arith.mulf %288, %287 : vector<8x32xf32>
    %293 = arith.addf %291, %292 : vector<8x32xf32>
    %294 = math.tanh %293 : vector<8x32xf32>
    %295 = arith.mulf %290, %294 : vector<8x32xf32>
    %296 = arith.truncf %295 : vector<8x32xf32> to vector<8x32xbf16>
    %cst_54 = arith.constant dense<0.000000e+00> : vector<8x128xf32>
    %297 = tpu.matmul %296, %9, %cst_54 {dimension_numbers = #tpu.dot_dimension_numbers<[1], [0], [0], [1], [0, 0, 1, 1], [], []>} : vector<8x32xbf16>, vector<32x128xbf16>, vector<8x128xf32> -> vector<8x128xf32>
    %298 = arith.truncf %275 : vector<8x32xf32> to vector<8x32xbf16>
    %cst_55 = arith.constant dense<0.000000e+00> : vector<8x128xf32>
    %299 = tpu.matmul %298, %10, %cst_55 {dimension_numbers = #tpu.dot_dimension_numbers<[1], [0], [0], [1], [0, 0, 1, 1], [], []>} : vector<8x32xbf16>, vector<32x128xbf16>, vector<8x128xf32> -> vector<8x128xf32>
    %300 = arith.addf %297, %299 : vector<8x128xf32>
    %301 = vector.broadcast %11 : vector<1x128xf32> to vector<8x128xf32>
    %302 = arith.addf %300, %301 : vector<8x128xf32>
    %303 = vector.extract_strided_slice %302 {offsets = [0, 0], sizes = [8, 96], strides = [1, 1]} : vector<8x128xf32> to vector<8x96xf32>
    %304 = arith.negf %303 : vector<8x96xf32>
    %305 = math.exp %304 : vector<8x96xf32>
    %cst_56 = arith.constant 1.000000e+00 : f32
    %306 = vector.broadcast %cst_56 : f32 to vector<8x96xf32>
    %307 = arith.addf %306, %305 : vector<8x96xf32>
    %308 = arith.divf %306, %307 : vector<8x96xf32>
    %309 = vector.extract_strided_slice %302 {offsets = [0, 96], sizes = [8, 32], strides = [1, 1]} : vector<8x128xf32> to vector<8x32xf32>
    %310 = math.tanh %309 : vector<8x32xf32>
    %311 = vector.extract_strided_slice %308 {offsets = [0, 0], sizes = [8, 32], strides = [1, 1]} : vector<8x96xf32> to vector<8x32xf32>
    %312 = vector.extract_strided_slice %308 {offsets = [0, 32], sizes = [8, 32], strides = [1, 1]} : vector<8x96xf32> to vector<8x32xf32>
    %313 = vector.extract_strided_slice %308 {offsets = [0, 64], sizes = [8, 32], strides = [1, 1]} : vector<8x96xf32> to vector<8x32xf32>
    %314 = arith.mulf %312, %273 : vector<8x32xf32>
    %315 = arith.mulf %311, %310 : vector<8x32xf32>
    %316 = arith.addf %314, %315 : vector<8x32xf32>
    %317 = math.tanh %316 : vector<8x32xf32>
    %318 = arith.mulf %313, %317 : vector<8x32xf32>
    %319 = vector.extract_strided_slice %7 {offsets = [56, 0], sizes = [8, 128], strides = [1, 1]} : vector<64x128xf32> to vector<8x128xf32>
    %320 = arith.truncf %295 : vector<8x32xf32> to vector<8x32xbf16>
    %cst_57 = arith.constant dense<0.000000e+00> : vector<8x128xf32>
    %321 = tpu.matmul %320, %8, %cst_57 {dimension_numbers = #tpu.dot_dimension_numbers<[1], [0], [0], [1], [0, 0, 1, 1], [], []>} : vector<8x32xbf16>, vector<32x128xbf16>, vector<8x128xf32> -> vector<8x128xf32>
    %322 = arith.addf %319, %321 : vector<8x128xf32>
    %323 = vector.extract_strided_slice %322 {offsets = [0, 0], sizes = [8, 96], strides = [1, 1]} : vector<8x128xf32> to vector<8x96xf32>
    %324 = arith.negf %323 : vector<8x96xf32>
    %325 = math.exp %324 : vector<8x96xf32>
    %cst_58 = arith.constant 1.000000e+00 : f32
    %326 = vector.broadcast %cst_58 : f32 to vector<8x96xf32>
    %327 = arith.addf %326, %325 : vector<8x96xf32>
    %328 = arith.divf %326, %327 : vector<8x96xf32>
    %329 = vector.extract_strided_slice %322 {offsets = [0, 96], sizes = [8, 32], strides = [1, 1]} : vector<8x128xf32> to vector<8x32xf32>
    %330 = math.tanh %329 : vector<8x32xf32>
    %331 = vector.extract_strided_slice %328 {offsets = [0, 0], sizes = [8, 32], strides = [1, 1]} : vector<8x96xf32> to vector<8x32xf32>
    %332 = vector.extract_strided_slice %328 {offsets = [0, 32], sizes = [8, 32], strides = [1, 1]} : vector<8x96xf32> to vector<8x32xf32>
    %333 = vector.extract_strided_slice %328 {offsets = [0, 64], sizes = [8, 32], strides = [1, 1]} : vector<8x96xf32> to vector<8x32xf32>
    %334 = arith.mulf %332, %293 : vector<8x32xf32>
    %335 = arith.mulf %331, %330 : vector<8x32xf32>
    %336 = arith.addf %334, %335 : vector<8x32xf32>
    %337 = math.tanh %336 : vector<8x32xf32>
    %338 = arith.mulf %333, %337 : vector<8x32xf32>
    %339 = arith.truncf %338 : vector<8x32xf32> to vector<8x32xbf16>
    %cst_59 = arith.constant dense<0.000000e+00> : vector<8x128xf32>
    %340 = tpu.matmul %339, %9, %cst_59 {dimension_numbers = #tpu.dot_dimension_numbers<[1], [0], [0], [1], [0, 0, 1, 1], [], []>} : vector<8x32xbf16>, vector<32x128xbf16>, vector<8x128xf32> -> vector<8x128xf32>
    %341 = arith.truncf %318 : vector<8x32xf32> to vector<8x32xbf16>
    %cst_60 = arith.constant dense<0.000000e+00> : vector<8x128xf32>
    %342 = tpu.matmul %341, %10, %cst_60 {dimension_numbers = #tpu.dot_dimension_numbers<[1], [0], [0], [1], [0, 0, 1, 1], [], []>} : vector<8x32xbf16>, vector<32x128xbf16>, vector<8x128xf32> -> vector<8x128xf32>
    %343 = arith.addf %340, %342 : vector<8x128xf32>
    %344 = vector.broadcast %11 : vector<1x128xf32> to vector<8x128xf32>
    %345 = arith.addf %343, %344 : vector<8x128xf32>
    %346 = vector.extract_strided_slice %345 {offsets = [0, 0], sizes = [8, 96], strides = [1, 1]} : vector<8x128xf32> to vector<8x96xf32>
    %347 = arith.negf %346 : vector<8x96xf32>
    %348 = math.exp %347 : vector<8x96xf32>
    %cst_61 = arith.constant 1.000000e+00 : f32
    %349 = vector.broadcast %cst_61 : f32 to vector<8x96xf32>
    %350 = arith.addf %349, %348 : vector<8x96xf32>
    %351 = arith.divf %349, %350 : vector<8x96xf32>
    %352 = vector.extract_strided_slice %345 {offsets = [0, 96], sizes = [8, 32], strides = [1, 1]} : vector<8x128xf32> to vector<8x32xf32>
    %353 = math.tanh %352 : vector<8x32xf32>
    %354 = vector.extract_strided_slice %351 {offsets = [0, 0], sizes = [8, 32], strides = [1, 1]} : vector<8x96xf32> to vector<8x32xf32>
    %355 = vector.extract_strided_slice %351 {offsets = [0, 32], sizes = [8, 32], strides = [1, 1]} : vector<8x96xf32> to vector<8x32xf32>
    %356 = vector.extract_strided_slice %351 {offsets = [0, 64], sizes = [8, 32], strides = [1, 1]} : vector<8x96xf32> to vector<8x32xf32>
    %357 = arith.mulf %355, %316 : vector<8x32xf32>
    %358 = arith.mulf %354, %353 : vector<8x32xf32>
    %359 = arith.addf %357, %358 : vector<8x32xf32>
    %360 = math.tanh %359 : vector<8x32xf32>
    %361 = arith.mulf %356, %360 : vector<8x32xf32>
    %362 = arith.truncf %361 : vector<8x32xf32> to vector<8x32xbf16>
    %cst_62 = arith.constant dense<0.000000e+00> : vector<8x1xf32>
    %363 = tpu.matmul %362, %12, %cst_62 {dimension_numbers = #tpu.dot_dimension_numbers<[1], [0], [0], [1], [0, 0, 1, 1], [], []>} : vector<8x32xbf16>, vector<32x1xbf16>, vector<8x1xf32> -> vector<8x1xf32>
    %364 = vector.broadcast %13 : vector<1x1xf32> to vector<8x1xf32>
    %365 = arith.addf %363, %364 : vector<8x1xf32>
    %366 = arith.negf %365 : vector<8x1xf32>
    %367 = math.exp %366 : vector<8x1xf32>
    %cst_63 = arith.constant 1.000000e+00 : f32
    %368 = vector.broadcast %cst_63 : f32 to vector<8x1xf32>
    %369 = arith.addf %368, %367 : vector<8x1xf32>
    %370 = arith.divf %368, %369 : vector<8x1xf32>
    %c0_64 = arith.constant 0 : index
    %c0_65 = arith.constant 0 : index
    %371 = vector.load %arg9[%c0_64, %c0_65] : memref<8x1xf32, #tpu.memory_space<vmem>>, vector<8x1xf32>
    tpu.vector_store %arg9[%c0_64, %c0_65], %370 {strides = array<i32>} : memref<8x1xf32, #tpu.memory_space<vmem>>, vector<8x1xf32>,
    return
  }
}

</mosaic_0001>

<llo_original>
// kernel: tpu_custom_call.1
$region0: #{tpu_custom_call.1}
  #allocation0 [shape = 'u32[]', space=smem, size = 0x4, offset = 0x4, fixed_abs, tag = 'smem constant byte address 0x4 - core index']
  #allocation1 [shape = 'u32[144,128]{1,0:T(1,128)}', space=vmem, size = 0x12000, scoped, tag = 'internal scratch']
  #allocation2 [shape = 'f32[1,1]{1,0:T(1,128)S(1)}', space=vmem, size = 0x200, scoped, tag = 'scoped memory for tpu_custom_call.1']
  %s0 = inlined_call_operand.vmem [shape: f32[8,8,4], index: 0, kind: input, shape index: {}]
  %s1 = inlined_call_operand.vmem [shape: bf16[4,128], index: 1, kind: input, shape index: {}]
  %s2 = inlined_call_operand.vmem [shape: bf16[32,128], index: 2, kind: input, shape index: {}]
  %s3 = inlined_call_operand.vmem [shape: f32[1,128], index: 3, kind: input, shape index: {}]
  %s4 = inlined_call_operand.vmem [shape: bf16[32,128], index: 4, kind: input, shape index: {}]
  %s5 = inlined_call_operand.vmem [shape: bf16[32,128], index: 5, kind: input, shape index: {}]
  %s6 = inlined_call_operand.vmem [shape: f32[1,128], index: 6, kind: input, shape index: {}]
  %s7 = inlined_call_operand.vmem [shape: bf16[32,1], index: 7, kind: input, shape index: {}]
  %s8 = inlined_call_operand.<no memory space> [shape: f32[1,1], index: 8, kind: input, shape index: {}]
  %s9 = inlined_call_operand.vmem [shape: f32[8,1], index: 9, kind: output, shape index: {}]
  %s10 = sld [smem:[#allocation0]]
  $region46: #{tpu_custom_call.1} parent=0
    _
  %s12 = ssub.s32 1, %s10
  %s13 = scalar_select 0, %s12, %s10
  %v14 = vstv %s8
  %15 = vst [vmem:[#allocation2] sm:$0x1] %v14
  // Predicated region
  $region2: #{tpu_custom_call.1} parent=0 // pred_check
    _
  $region3: #{tpu_custom_call.1} parent=0 // pred_check_branch
    %17 = sbr.rel (0) target = $region5
  $region4: #{tpu_custom_call.1} parent=0 // pred_region
    _
  $region5: #{tpu_custom_call.1} parent=0 // pred_fallthru
    _
  // Predicated region
  $region6: #{tpu_custom_call.1} parent=0 // pred_check
    _
  $region7: #{tpu_custom_call.1} parent=0 // pred_check_branch
    %19 = sbr.rel (0) target = $region9
  $region8: #{tpu_custom_call.1} parent=0 // pred_region
    _
  $region9: #{tpu_custom_call.1} parent=0 // pred_fallthru
    _
  // Predicated region
  $region10: #{tpu_custom_call.1} parent=0 // pred_check
    _
  $region11: #{tpu_custom_call.1} parent=0 // pred_check_branch
    %21 = sbr.rel (0) target = $region13
  $region12: #{tpu_custom_call.1} parent=0 // pred_region
    _
  $region13: #{tpu_custom_call.1} parent=0 // pred_fallthru
    _
  // Predicated region
  $region14: #{tpu_custom_call.1} parent=0 // pred_check
    _
  $region15: #{tpu_custom_call.1} parent=0 // pred_check_branch
    %23 = sbr.rel (0) target = $region17
  $region16: #{tpu_custom_call.1} parent=0 // pred_region
    _
  $region17: #{tpu_custom_call.1} parent=0 // pred_fallthru
    _
  // Predicated region
  $region18: #{tpu_custom_call.1} parent=0 // pred_check
    _
  $region19: #{tpu_custom_call.1} parent=0 // pred_check_branch
    %25 = sbr.rel (0) target = $region21
  $region20: #{tpu_custom_call.1} parent=0 // pred_region
    _
  $region21: #{tpu_custom_call.1} parent=0 // pred_fallthru
    _
  // Predicated region
  $region22: #{tpu_custom_call.1} parent=0 // pred_check
    _
  $region23: #{tpu_custom_call.1} parent=0 // pred_check_branch
    %27 = sbr.rel (0) target = $region25
  $region24: #{tpu_custom_call.1} parent=0 // pred_region
    _
  $region25: #{tpu_custom_call.1} parent=0 // pred_fallthru
    _
  // Predicated region
  $region26: #{tpu_custom_call.1} parent=0 // pred_check
    _
  $region27: #{tpu_custom_call.1} parent=0 // pred_check_branch
    %29 = sbr.rel (0) target = $region29
  $region28: #{tpu_custom_call.1} parent=0 // pred_region
    _
  $region29: #{tpu_custom_call.1} parent=0 // pred_fallthru
    _
  // Predicated region
  $region30: #{tpu_custom_call.1} parent=0 // pred_check
    _
  $region31: #{tpu_custom_call.1} parent=0 // pred_check_branch
    %31 = sbr.rel (0) target = $region33
  $region32: #{tpu_custom_call.1} parent=0 // pred_region
    _
  $region33: #{tpu_custom_call.1} parent=0 // pred_fallthru
    _
  // Predicated region
  $region34: #{tpu_custom_call.1} parent=0 // pred_check
    _
  $region35: #{tpu_custom_call.1} parent=0 // pred_check_branch
    %33 = sbr.rel (0) target = $region37
  $region36: #{tpu_custom_call.1} parent=0 // pred_region
    _
  $region37: #{tpu_custom_call.1} parent=0 // pred_fallthru
    _
  %v35 = vld [vmem:[%s0] sm:$0xff]
  %v36 = vld [vmem:[%s0 + $0x8] sm:$0xff]
  %v37 = vld [vmem:[%s0 + $0x10] sm:$0xff]
  %v38 = vld [vmem:[%s0 + $0x18] sm:$0xff]
  %v39 = vld [vmem:[%s0 + $0x20] sm:$0xff]
  %v40 = vld [vmem:[%s0 + $0x28] sm:$0xff]
  %v41 = vld [vmem:[%s0 + $0x30] sm:$0xff]
  %v42 = vld [vmem:[%s0 + $0x38] sm:$0xff]
  %v43 = vpack.c.bf16 %v36, %v35
  %v44 = vpack.c.bf16 %v38, %v37
  %v45 = vpack.c.bf16 %v40, %v39
  %v46 = vpack.c.bf16 %v42, %v41
  %v47 = vld [vmem:[%s1] sm:$0x3]
  %v48 = vld [vmem:[%s3] sm:$0x1]
  %v50 = vlaneseq
  %v51 = vshrl.u32 %v50, 7
  %v52 = vsub.s32 0, %v51
  %v53 = vrot.slane %v48, %v52
  %vm55 = vcmask 31744
  %v57 = vsel %vm55, %v43, 0
  %v60 = vsel %vm55, %v44, 0
  %v63 = vsel %vm55, %v45, 0
  %v66 = vsel %vm55, %v46, 0
  %vm68 = vcmask 1041408
  %v70 = vsel %vm68, %v47, 0
  %72 = vmatprep.subr.bf16.mxu0 0
  %73 = vmatpush1.bf16.msra.mxu0 %v70
  %74 = vmatprep.subr.bf16.mxu0 0
  %75 = vmatpush1.bf16.msra.mxu0 0
  %76 = vmatprep.subr.bf16.mxu0 0
  %77 = vmatpush1.bf16.msra.mxu0 0
  %78 = vmatprep.subr.bf16.mxu0 0
  %79 = vmatpush1.bf16.msra.mxu0 0
  %80 = vmatprep.subr.bf16.mxu0 0
  %81 = vmatpush1.bf16.msra.mxu0 0
  %82 = vmatprep.subr.bf16.mxu0 0
  %83 = vmatpush1.bf16.msra.mxu0 0
  %84 = vmatprep.subr.bf16.mxu0 0
  %85 = vmatpush1.bf16.msra.mxu0 0
  %86 = vmatprep.subr.bf16.mxu0 0
  %87 = vmatpush1.bf16.msra.mxu0 0
  %88 = vmatprep.subr.bf16.mxu0 0
  %89 = vmatpush1.bf16.msra.mxu0 0
  %90 = vmatprep.subr.bf16.mxu0 0
  %91 = vmatpush1.bf16.msra.mxu0 0
  %92 = vmatprep.subr.bf16.mxu0 0
  %93 = vmatpush1.bf16.msra.mxu0 0
  %94 = vmatprep.subr.bf16.mxu0 0
  %95 = vmatpush1.bf16.msra.mxu0 0
  %96 = vmatprep.subr.bf16.mxu0 0
  %97 = vmatpush1.bf16.msra.mxu0 0
  %98 = vmatprep.subr.bf16.mxu0 0
  %99 = vmatpush1.bf16.msra.mxu0 0
  %100 = vmatprep.subr.bf16.mxu0 0
  %101 = vmatpush1.bf16.msra.mxu0 0
  %102 = vmatprep.subr.bf16.mxu0 0
  %103 = vmatpush1.bf16.msra.mxu0 0
  %104 = vmatprep.mubr.bf16.mxu0 0
  %105 = vmatmul.mubr.bf16.gmra.mrb[0].mxu0 %v57
  %v106 = vpop.f32.mrb[0].mxu0
  %v107 = vadd.f32 %v53, %v106
  %v108 = vpop.f32.mrb[0].mxu0
  %v109 = vpop.f32.mrb[0].mxu0
  %v110 = vadd.f32 %v53, %v109
  %v111 = vpop.f32.mrb[0].mxu0
  %112 = vmatprep.mubr.bf16.mxu0 0
  %113 = vmatmul.mubr.bf16.gmra.mrb[0].mxu0 %v60
  %v114 = vpop.f32.mrb[0].mxu0
  %v115 = vadd.f32 %v53, %v114
  %v116 = vpop.f32.mrb[0].mxu0
  %v117 = vpop.f32.mrb[0].mxu0
  %v118 = vadd.f32 %v53, %v117
  %v119 = vpop.f32.mrb[0].mxu0
  %120 = vmatprep.mubr.bf16.mxu0 0
  %121 = vmatmul.mubr.bf16.gmra.mrb[0].mxu0 %v63
  %v122 = vpop.f32.mrb[0].mxu0
  %v123 = vadd.f32 %v53, %v122
  %v124 = vpop.f32.mrb[0].mxu0
  %v125 = vpop.f32.mrb[0].mxu0
  %v126 = vadd.f32 %v53, %v125
  %v127 = vpop.f32.mrb[0].mxu0
  %128 = vmatprep.mubr.bf16.mxu0 0
  %129 = vmatmul.mubr.bf16.gmra.mrb[0].mxu0 %v66
  %v130 = vpop.f32.mrb[0].mxu0
  %v131 = vadd.f32 %v53, %v130
  %v132 = vpop.f32.mrb[0].mxu0
  %v133 = vpop.f32.mrb[0].mxu0
  %v134 = vadd.f32 %v53, %v133
  %v135 = vpop.f32.mrb[0].mxu0
  %136 = vdwg.mxu0
  %v137 = vld [vmem:[%s2] sm:$0xf]
  %v138 = vld [vmem:[%s2 + $0x4] sm:$0xf]
  %v139 = vld [vmem:[%s2 + $0x8] sm:$0xf]
  %v140 = vld [vmem:[%s2 + $0xc] sm:$0xf]
  %v141 = vld [vmem:[%s4] sm:$0xf]
  %v142 = vld [vmem:[%s4 + $0x4] sm:$0xf]
  %v143 = vld [vmem:[%s4 + $0x8] sm:$0xf]
  %v144 = vld [vmem:[%s4 + $0xc] sm:$0xf]
  %v145 = vld [vmem:[%s5] sm:$0xf]
  %v146 = vld [vmem:[%s5 + $0x4] sm:$0xf]
  %v147 = vld [vmem:[%s5 + $0x8] sm:$0xf]
  %v148 = vld [vmem:[%s5 + $0xc] sm:$0xf]
  %v149 = vld [vmem:[%s6] sm:$0x1]
  %v150 = vld [vmem:[%s7] sm:$0xf]
  %v151 = vld [vmem:[%s7 + $0x4] sm:$0xf]
  %v152 = vld [vmem:[%s7 + $0x8] sm:$0xf]
  %v153 = vld [vmem:[%s7 + $0xc] sm:$0xf]
  %v154 = vld [vmem:[#allocation2] sm:$0x1]
  %v159 = vunpack.c.l.b16 %v137
  %v160 = vunpack.c.l.b16 %v138
  %v161 = vunpack.c.l.b16 %v139
  %v162 = vunpack.c.l.b16 %v140
  %v163 = vpack.c.b16 %v160, %v159
  %v164 = vpack.c.b16 %v162, %v161
  %vm167 = vcmask 261120
  %v169 = vsel %vm167, 0, 0
  %171 = vmatprep.subr.bf16.mxu0 0
  %172 = vmatpush1.bf16.msra.mxu0 %v163
  %173 = vmatprep.subr.bf16.mxu0 0
  %174 = vmatpush1.bf16.msra.mxu0 %v164
  %175 = vmatprep.subr.bf16.mxu0 0
  %176 = vmatpush1.bf16.msra.mxu0 0
  %177 = vmatprep.subr.bf16.mxu0 0
  %178 = vmatpush1.bf16.msra.mxu0 0
  %179 = vmatprep.subr.bf16.mxu0 0
  %180 = vmatpush1.bf16.msra.mxu0 0
  %181 = vmatprep.subr.bf16.mxu0 0
  %182 = vmatpush1.bf16.msra.mxu0 0
  %183 = vmatprep.subr.bf16.mxu0 0
  %184 = vmatpush1.bf16.msra.mxu0 0
  %185 = vmatprep.subr.bf16.mxu0 0
  %186 = vmatpush1.bf16.msra.mxu0 0
  %187 = vmatprep.subr.bf16.mxu0 0
  %188 = vmatpush1.bf16.msra.mxu0 0
  %189 = vmatprep.subr.bf16.mxu0 0
  %190 = vmatpush1.bf16.msra.mxu0 0
  %191 = vmatprep.subr.bf16.mxu0 0
  %192 = vmatpush1.bf16.msra.mxu0 0
  %193 = vmatprep.subr.bf16.mxu0 0
  %194 = vmatpush1.bf16.msra.mxu0 0
  %195 = vmatprep.subr.bf16.mxu0 0
  %196 = vmatpush1.bf16.msra.mxu0 0
  %197 = vmatprep.subr.bf16.mxu0 0
  %198 = vmatpush1.bf16.msra.mxu0 0
  %199 = vmatprep.subr.bf16.mxu0 0
  %200 = vmatpush1.bf16.msra.mxu0 0
  %201 = vmatprep.subr.bf16.mxu0 0
  %202 = vmatpush1.bf16.msra.mxu0 0
  %203 = vmatprep.mubr.bf16.mxu0 0
  %204 = vmatmul.mubr.bf16.gmra.mrb[0].mxu0 %v169
  %v205 = vpop.f32.mrb[0].mxu0
  %v206 = vadd.f32 0.0, %v205
  %v207 = vpop.f32.mrb[0].mxu0
  %v208 = vpop.f32.mrb[0].mxu0
  %v209 = vpop.f32.mrb[0].mxu0
  %210 = vdwg.mxu0
  %v211 = vadd.f32 %v107, %v206
  %v212 = vxor.u32 %v211, 2147483648
  %v213 = vmul.f32 %v212, 1.442695
  %v214 = vpow.pop %v213
  %v215 = vadd.f32 %v214, 1.0
  %v216 = vrcp.pop %v215
  %v217 = vmul.f32 1.0, %v216
  %v218 = vtanh.pop %v211
  %v219 = vmul.f32 %v217, 0.0
  %221 = vrot.lane.b32.xlu0 %v218, 32
  %v222 = vpop.permute.xlu0 %221
  %v224 = vmul.f32 %v217, %v222
  %226 = vrot.lane.b32.xlu0 %v224, 32
  %v227 = vpop.permute.xlu0 %226
  %v229 = vadd.f32 %v219, %v227
  %v230 = vtanh.pop %v229
  %232 = vrot.lane.b32.xlu0 %v230, 32
  %v233 = vpop.permute.xlu0 %232
  %v235 = vmul.f32 %v217, %v233
  %v236 = vpack.c.bf16 %v235, %v235
  %v241 = vunpack.c.l.b16 %v145
  %v242 = vunpack.c.l.b16 %v146
  %v243 = vunpack.c.l.b16 %v147
  %v244 = vunpack.c.l.b16 %v148
  %v245 = vpack.c.b16 %v242, %v241
  %v246 = vpack.c.b16 %v244, %v243
  %249 = vmatprep.subr.bf16.mxu0 0
  %250 = vmatpush1.bf16.msra.mxu0 %v245
  %251 = vmatprep.subr.bf16.mxu0 0
  %252 = vmatpush1.bf16.msra.mxu0 %v246
  %253 = vmatprep.subr.bf16.mxu0 0
  %254 = vmatpush1.bf16.msra.mxu0 0
  %255 = vmatprep.subr.bf16.mxu0 0
  %256 = vmatpush1.bf16.msra.mxu0 0
  %257 = vmatprep.subr.bf16.mxu0 0
  %258 = vmatpush1.bf16.msra.mxu0 0
  %259 = vmatprep.subr.bf16.mxu0 0
  %260 = vmatpush1.bf16.msra.mxu0 0
  %261 = vmatprep.subr.bf16.mxu0 0
  %262 = vmatpush1.bf16.msra.mxu0 0
  %263 = vmatprep.subr.bf16.mxu0 0
  %264 = vmatpush1.bf16.msra.mxu0 0
  %265 = vmatprep.subr.bf16.mxu0 0
  %266 = vmatpush1.bf16.msra.mxu0 0
  %267 = vmatprep.subr.bf16.mxu0 0
  %268 = vmatpush1.bf16.msra.mxu0 0
  %269 = vmatprep.subr.bf16.mxu0 0
  %270 = vmatpush1.bf16.msra.mxu0 0
  %271 = vmatprep.subr.bf16.mxu0 0
  %272 = vmatpush1.bf16.msra.mxu0 0
  %273 = vmatprep.subr.bf16.mxu0 0
  %274 = vmatpush1.bf16.msra.mxu0 0
  %275 = vmatprep.subr.bf16.mxu0 0
  %276 = vmatpush1.bf16.msra.mxu0 0
  %277 = vmatprep.subr.bf16.mxu0 0
  %278 = vmatpush1.bf16.msra.mxu0 0
  %279 = vmatprep.subr.bf16.mxu0 0
  %280 = vmatpush1.bf16.msra.mxu0 0
  %281 = vmatprep.mubr.bf16.mxu0 0
  %282 = vmatmul.mubr.bf16.gmra.mrb[0].mxu0 %v169
  %v283 = vpop.f32.mrb[0].mxu0
  %v284 = vadd.f32 0.0, %v283
  %v285 = vpop.f32.mrb[0].mxu0
  %v286 = vpop.f32.mrb[0].mxu0
  %v287 = vpop.f32.mrb[0].mxu0
  %288 = vdwg.mxu0
  %290 = vrot.lane.b32.xlu0 %v236, 64
  %v291 = vpop.permute.xlu0 %290
  %v296 = vunpack.c.l.b16 %v141
  %v297 = vunpack.c.l.b16 %v142
  %v298 = vunpack.c.l.b16 %v143
  %v299 = vunpack.c.l.b16 %v144
  %v300 = vpack.c.b16 %v297, %v296
  %v301 = vpack.c.b16 %v299, %v298
  %v305 = vsel %vm167, %v291, 0
  %307 = vmatprep.subr.bf16.mxu0 0
  %308 = vmatpush1.bf16.msra.mxu0 %v300
  %309 = vmatprep.subr.bf16.mxu0 0
  %310 = vmatpush1.bf16.msra.mxu0 %v301
  %311 = vmatprep.subr.bf16.mxu0 0
  %312 = vmatpush1.bf16.msra.mxu0 0
  %313 = vmatprep.subr.bf16.mxu0 0
  %314 = vmatpush1.bf16.msra.mxu0 0
  %315 = vmatprep.subr.bf16.mxu0 0
  %316 = vmatpush1.bf16.msra.mxu0 0
  %317 = vmatprep.subr.bf16.mxu0 0
  %318 = vmatpush1.bf16.msra.mxu0 0
  %319 = vmatprep.subr.bf16.mxu0 0
  %320 = vmatpush1.bf16.msra.mxu0 0
  %321 = vmatprep.subr.bf16.mxu0 0
  %322 = vmatpush1.bf16.msra.mxu0 0
  %323 = vmatprep.subr.bf16.mxu0 0
  %324 = vmatpush1.bf16.msra.mxu0 0
  %325 = vmatprep.subr.bf16.mxu0 0
  %326 = vmatpush1.bf16.msra.mxu0 0
  %327 = vmatprep.subr.bf16.mxu0 0
  %328 = vmatpush1.bf16.msra.mxu0 0
  %329 = vmatprep.subr.bf16.mxu0 0
  %330 = vmatpush1.bf16.msra.mxu0 0
  %331 = vmatprep.subr.bf16.mxu0 0
  %332 = vmatpush1.bf16.msra.mxu0 0
  %333 = vmatprep.subr.bf16.mxu0 0
  %334 = vmatpush1.bf16.msra.mxu0 0
  %335 = vmatprep.subr.bf16.mxu0 0
  %336 = vmatpush1.bf16.msra.mxu0 0
  %337 = vmatprep.subr.bf16.mxu0 0
  %338 = vmatpush1.bf16.msra.mxu0 0
  %339 = vmatprep.mubr.bf16.mxu0 0
  %340 = vmatmul.mubr.bf16.gmra.mrb[0].mxu0 %v305
  %v341 = vpop.f32.mrb[0].mxu0
  %v342 = vadd.f32 %v284, %v341
  %v343 = vpop.f32.mrb[0].mxu0
  %v344 = vpop.f32.mrb[0].mxu0
  %v345 = vpop.f32.mrb[0].mxu0
  %346 = vdwg.mxu0
  %v348 = vlaneseq
  %v349 = vshrl.u32 %v348, 7
  %v350 = vsub.s32 0, %v349
  %v351 = vrot.slane %v149, %v350
  %v353 = vadd.f32 %v342, %v351
  %v354 = vxor.u32 %v353, 2147483648
  %v355 = vmul.f32 %v354, 1.442695
  %v356 = vpow.pop %v355
  %v357 = vadd.f32 %v356, 1.0
  %v358 = vrcp.pop %v357
  %v359 = vmul.f32 1.0, %v358
  %v360 = vtanh.pop %v353
  %v361 = vmul.f32 %v359, 0.0
  %363 = vrot.lane.b32.xlu0 %v360, 32
  %v364 = vpop.permute.xlu0 %363
  %v366 = vmul.f32 %v359, %v364
  %368 = vrot.lane.b32.xlu0 %v366, 32
  %v369 = vpop.permute.xlu0 %368
  %v371 = vadd.f32 %v361, %v369
  %v372 = vtanh.pop %v371
  %374 = vrot.lane.b32.xlu0 %v372, 32
  %v375 = vpop.permute.xlu0 %374
  %v377 = vmul.f32 %v359, %v375
  %378 = vmatprep.subr.bf16.mxu0 0
  %379 = vmatpush1.bf16.msra.mxu0 %v163
  %380 = vmatprep.subr.bf16.mxu0 0
  %381 = vmatpush1.bf16.msra.mxu0 %v164
  %382 = vmatprep.subr.bf16.mxu0 0
  %383 = vmatpush1.bf16.msra.mxu0 0
  %384 = vmatprep.subr.bf16.mxu0 0
  %385 = vmatpush1.bf16.msra.mxu0 0
  %386 = vmatprep.subr.bf16.mxu0 0
  %387 = vmatpush1.bf16.msra.mxu0 0
  %388 = vmatprep.subr.bf16.mxu0 0
  %389 = vmatpush1.bf16.msra.mxu0 0
  %390 = vmatprep.subr.bf16.mxu0 0
  %391 = vmatpush1.bf16.msra.mxu0 0
  %392 = vmatprep.subr.bf16.mxu0 0
  %393 = vmatpush1.bf16.msra.mxu0 0
  %394 = vmatprep.subr.bf16.mxu0 0
  %395 = vmatpush1.bf16.msra.mxu0 0
  %396 = vmatprep.subr.bf16.mxu0 0
  %397 = vmatpush1.bf16.msra.mxu0 0
  %398 = vmatprep.subr.bf16.mxu0 0
  %399 = vmatpush1.bf16.msra.mxu0 0
  %400 = vmatprep.subr.bf16.mxu0 0
  %401 = vmatpush1.bf16.msra.mxu0 0
  %402 = vmatprep.subr.bf16.mxu0 0
  %403 = vmatpush1.bf16.msra.mxu0 0
  %404 = vmatprep.subr.bf16.mxu0 0
  %405 = vmatpush1.bf16.msra.mxu0 0
  %406 = vmatprep.subr.bf16.mxu0 0
  %407 = vmatpush1.bf16.msra.mxu0 0
  %408 = vmatprep.subr.bf16.mxu0 0
  %409 = vmatpush1.bf16.msra.mxu0 0
  %410 = vmatprep.mubr.bf16.mxu0 0
  %411 = vmatmul.mubr.bf16.gmra.mrb[0].mxu0 %v305
  %v412 = vpop.f32.mrb[0].mxu0
  %v413 = vadd.f32 0.0, %v412
  %v414 = vpop.f32.mrb[0].mxu0
  %v415 = vpop.f32.mrb[0].mxu0
  %v416 = vpop.f32.mrb[0].mxu0
  %417 = vdwg.mxu0
  %v418 = vadd.f32 %v110, %v413
  %v419 = vxor.u32 %v418, 2147483648
  %v420 = vmul.f32 %v419, 1.442695
  %v421 = vpow.pop %v420
  %v422 = vadd.f32 %v421, 1.0
  %v423 = vrcp.pop %v422
  %v424 = vmul.f32 1.0, %v423
  %v425 = vtanh.pop %v418
  %v426 = vmul.f32 %v424, %v229
  %428 = vrot.lane.b32.xlu0 %v425, 32
  %v429 = vpop.permute.xlu0 %428
  %v431 = vmul.f32 %v424, %v429
  %433 = vrot.lane.b32.xlu0 %v431, 32
  %v434 = vpop.permute.xlu0 %433
  %v436 = vadd.f32 %v426, %v434
  %v437 = vtanh.pop %v436
  %439 = vrot.lane.b32.xlu0 %v437, 32
  %v440 = vpop.permute.xlu0 %439
  %v442 = vmul.f32 %v424, %v440
  %v443 = vpack.c.bf16 %v442, %v442
  %v444 = vpack.c.bf16 %v377, %v377
  %446 = vrot.lane.b32.xlu0 %v444, 64
  %v447 = vpop.permute.xlu0 %446
  %v449 = vsel %vm167, %v447, 0
  %451 = vmatprep.subr.bf16.mxu0 0
  %452 = vmatpush1.bf16.msra.mxu0 %v245
  %453 = vmatprep.subr.bf16.mxu0 0
  %454 = vmatpush1.bf16.msra.mxu0 %v246
  %455 = vmatprep.subr.bf16.mxu0 0
  %456 = vmatpush1.bf16.msra.mxu0 0
  %457 = vmatprep.subr.bf16.mxu0 0
  %458 = vmatpush1.bf16.msra.mxu0 0
  %459 = vmatprep.subr.bf16.mxu0 0
  %460 = vmatpush1.bf16.msra.mxu0 0
  %461 = vmatprep.subr.bf16.mxu0 0
  %462 = vmatpush1.bf16.msra.mxu0 0
  %463 = vmatprep.subr.bf16.mxu0 0
  %464 = vmatpush1.bf16.msra.mxu0 0
  %465 = vmatprep.subr.bf16.mxu0 0
  %466 = vmatpush1.bf16.msra.mxu0 0
  %467 = vmatprep.subr.bf16.mxu0 0
  %468 = vmatpush1.bf16.msra.mxu0 0
  %469 = vmatprep.subr.bf16.mxu0 0
  %470 = vmatpush1.bf16.msra.mxu0 0
  %471 = vmatprep.subr.bf16.mxu0 0
  %472 = vmatpush1.bf16.msra.mxu0 0
  %473 = vmatprep.subr.bf16.mxu0 0
  %474 = vmatpush1.bf16.msra.mxu0 0
  %475 = vmatprep.subr.bf16.mxu0 0
  %476 = vmatpush1.bf16.msra.mxu0 0
  %477 = vmatprep.subr.bf16.mxu0 0
  %478 = vmatpush1.bf16.msra.mxu0 0
  %479 = vmatprep.subr.bf16.mxu0 0
  %480 = vmatpush1.bf16.msra.mxu0 0
  %481 = vmatprep.subr.bf16.mxu0 0
  %482 = vmatpush1.bf16.msra.mxu0 0
  %483 = vmatprep.mubr.bf16.mxu0 0
  %484 = vmatmul.mubr.bf16.gmra.mrb[0].mxu0 %v449
  %v485 = vpop.f32.mrb[0].mxu0
  %v486 = vadd.f32 0.0, %v485
  %v487 = vpop.f32.mrb[0].mxu0
  %v488 = vpop.f32.mrb[0].mxu0
  %v489 = vpop.f32.mrb[0].mxu0
  %490 = vdwg.mxu0
  %492 = vrot.lane.b32.xlu0 %v443, 64
  %v493 = vpop.permute.xlu0 %492
  %v495 = vsel %vm167, %v493, 0
  %497 = vmatprep.subr.bf16.mxu0 0
  %498 = vmatpush1.bf16.msra.mxu0 %v300
  %499 = vmatprep.subr.bf16.mxu0 0
  %500 = vmatpush1.bf16.msra.mxu0 %v301
  %501 = vmatprep.subr.bf16.mxu0 0
  %502 = vmatpush1.bf16.msra.mxu0 0
  %503 = vmatprep.subr.bf16.mxu0 0
  %504 = vmatpush1.bf16.msra.mxu0 0
  %505 = vmatprep.subr.bf16.mxu0 0
  %506 = vmatpush1.bf16.msra.mxu0 0
  %507 = vmatprep.subr.bf16.mxu0 0
  %508 = vmatpush1.bf16.msra.mxu0 0
  %509 = vmatprep.subr.bf16.mxu0 0
  %510 = vmatpush1.bf16.msra.mxu0 0
  %511 = vmatprep.subr.bf16.mxu0 0
  %512 = vmatpush1.bf16.msra.mxu0 0
  %513 = vmatprep.subr.bf16.mxu0 0
  %514 = vmatpush1.bf16.msra.mxu0 0
  %515 = vmatprep.subr.bf16.mxu0 0
  %516 = vmatpush1.bf16.msra.mxu0 0
  %517 = vmatprep.subr.bf16.mxu0 0
  %518 = vmatpush1.bf16.msra.mxu0 0
  %519 = vmatprep.subr.bf16.mxu0 0
  %520 = vmatpush1.bf16.msra.mxu0 0
  %521 = vmatprep.subr.bf16.mxu0 0
  %522 = vmatpush1.bf16.msra.mxu0 0
  %523 = vmatprep.subr.bf16.mxu0 0
  %524 = vmatpush1.bf16.msra.mxu0 0
  %525 = vmatprep.subr.bf16.mxu0 0
  %526 = vmatpush1.bf16.msra.mxu0 0
  %527 = vmatprep.subr.bf16.mxu0 0
  %528 = vmatpush1.bf16.msra.mxu0 0
  %529 = vmatprep.mubr.bf16.mxu0 0
  %530 = vmatmul.mubr.bf16.gmra.mrb[0].mxu0 %v495
  %v531 = vpop.f32.mrb[0].mxu0
  %v532 = vadd.f32 %v486, %v531
  %v533 = vpop.f32.mrb[0].mxu0
  %v534 = vpop.f32.mrb[0].mxu0
  %v535 = vpop.f32.mrb[0].mxu0
  %536 = vdwg.mxu0
  %v537 = vadd.f32 %v532, %v351
  %v538 = vxor.u32 %v537, 2147483648
  %v539 = vmul.f32 %v538, 1.442695
  %v540 = vpow.pop %v539
  %v541 = vadd.f32 %v540, 1.0
  %v542 = vrcp.pop %v541
  %v543 = vmul.f32 1.0, %v542
  %v544 = vtanh.pop %v537
  %v545 = vmul.f32 %v543, %v371
  %547 = vrot.lane.b32.xlu0 %v544, 32
  %v548 = vpop.permute.xlu0 %547
  %v550 = vmul.f32 %v543, %v548
  %552 = vrot.lane.b32.xlu0 %v550, 32
  %v553 = vpop.permute.xlu0 %552
  %v555 = vadd.f32 %v545, %v553
  %v556 = vtanh.pop %v555
  %558 = vrot.lane.b32.xlu0 %v556, 32
  %v559 = vpop.permute.xlu0 %558
  %v561 = vmul.f32 %v543, %v559
  %562 = vmatprep.subr.bf16.mxu0 0
  %563 = vmatpush1.bf16.msra.mxu0 %v163
  %564 = vmatprep.subr.bf16.mxu0 0
  %565 = vmatpush1.bf16.msra.mxu0 %v164
  %566 = vmatprep.subr.bf16.mxu0 0
  %567 = vmatpush1.bf16.msra.mxu0 0
  %568 = vmatprep.subr.bf16.mxu0 0
  %569 = vmatpush1.bf16.msra.mxu0 0
  %570 = vmatprep.subr.bf16.mxu0 0
  %571 = vmatpush1.bf16.msra.mxu0 0
  %572 = vmatprep.subr.bf16.mxu0 0
  %573 = vmatpush1.bf16.msra.mxu0 0
  %574 = vmatprep.subr.bf16.mxu0 0
  %575 = vmatpush1.bf16.msra.mxu0 0
  %576 = vmatprep.subr.bf16.mxu0 0
  %577 = vmatpush1.bf16.msra.mxu0 0
  %578 = vmatprep.subr.bf16.mxu0 0
  %579 = vmatpush1.bf16.msra.mxu0 0
  %580 = vmatprep.subr.bf16.mxu0 0
  %581 = vmatpush1.bf16.msra.mxu0 0
  %582 = vmatprep.subr.bf16.mxu0 0
  %583 = vmatpush1.bf16.msra.mxu0 0
  %584 = vmatprep.subr.bf16.mxu0 0
  %585 = vmatpush1.bf16.msra.mxu0 0
  %586 = vmatprep.subr.bf16.mxu0 0
  %587 = vmatpush1.bf16.msra.mxu0 0
  %588 = vmatprep.subr.bf16.mxu0 0
  %589 = vmatpush1.bf16.msra.mxu0 0
  %590 = vmatprep.subr.bf16.mxu0 0
  %591 = vmatpush1.bf16.msra.mxu0 0
  %592 = vmatprep.subr.bf16.mxu0 0
  %593 = vmatpush1.bf16.msra.mxu0 0
  %594 = vmatprep.mubr.bf16.mxu0 0
  %595 = vmatmul.mubr.bf16.gmra.mrb[0].mxu0 %v495
  %v596 = vpop.f32.mrb[0].mxu0
  %v597 = vadd.f32 0.0, %v596
  %v598 = vpop.f32.mrb[0].mxu0
  %v599 = vpop.f32.mrb[0].mxu0
  %v600 = vpop.f32.mrb[0].mxu0
  %601 = vdwg.mxu0
  %v602 = vadd.f32 %v115, %v597
  %v603 = vxor.u32 %v602, 2147483648
  %v604 = vmul.f32 %v603, 1.442695
  %v605 = vpow.pop %v604
  %v606 = vadd.f32 %v605, 1.0
  %v607 = vrcp.pop %v606
  %v608 = vmul.f32 1.0, %v607
  %v609 = vtanh.pop %v602
  %v610 = vmul.f32 %v608, %v436
  %612 = vrot.lane.b32.xlu0 %v609, 32
  %v613 = vpop.permute.xlu0 %612
  %v615 = vmul.f32 %v608, %v613
  %617 = vrot.lane.b32.xlu0 %v615, 32
  %v618 = vpop.permute.xlu0 %617
  %v620 = vadd.f32 %v610, %v618
  %v621 = vtanh.pop %v620
  %623 = vrot.lane.b32.xlu0 %v621, 32
  %v624 = vpop.permute.xlu0 %623
  %v626 = vmul.f32 %v608, %v624
  %v627 = vpack.c.bf16 %v626, %v626
  %v628 = vpack.c.bf16 %v561, %v561
  %630 = vrot.lane.b32.xlu0 %v628, 64
  %v631 = vpop.permute.xlu0 %630
  %v633 = vsel %vm167, %v631, 0
  %635 = vmatprep.subr.bf16.mxu0 0
  %636 = vmatpush1.bf16.msra.mxu0 %v245
  %637 = vmatprep.subr.bf16.mxu0 0
  %638 = vmatpush1.bf16.msra.mxu0 %v246
  %639 = vmatprep.subr.bf16.mxu0 0
  %640 = vmatpush1.bf16.msra.mxu0 0
  %641 = vmatprep.subr.bf16.mxu0 0
  %642 = vmatpush1.bf16.msra.mxu0 0
  %643 = vmatprep.subr.bf16.mxu0 0
  %644 = vmatpush1.bf16.msra.mxu0 0
  %645 = vmatprep.subr.bf16.mxu0 0
  %646 = vmatpush1.bf16.msra.mxu0 0
  %647 = vmatprep.subr.bf16.mxu0 0
  %648 = vmatpush1.bf16.msra.mxu0 0
  %649 = vmatprep.subr.bf16.mxu0 0
  %650 = vmatpush1.bf16.msra.mxu0 0
  %651 = vmatprep.subr.bf16.mxu0 0
  %652 = vmatpush1.bf16.msra.mxu0 0
  %653 = vmatprep.subr.bf16.mxu0 0
  %654 = vmatpush1.bf16.msra.mxu0 0
  %655 = vmatprep.subr.bf16.mxu0 0
  %656 = vmatpush1.bf16.msra.mxu0 0
  %657 = vmatprep.subr.bf16.mxu0 0
  %658 = vmatpush1.bf16.msra.mxu0 0
  %659 = vmatprep.subr.bf16.mxu0 0
  %660 = vmatpush1.bf16.msra.mxu0 0
  %661 = vmatprep.subr.bf16.mxu0 0
  %662 = vmatpush1.bf16.msra.mxu0 0
  %663 = vmatprep.subr.bf16.mxu0 0
  %664 = vmatpush1.bf16.msra.mxu0 0
  %665 = vmatprep.subr.bf16.mxu0 0
  %666 = vmatpush1.bf16.msra.mxu0 0
  %667 = vmatprep.mubr.bf16.mxu0 0
  %668 = vmatmul.mubr.bf16.gmra.mrb[0].mxu0 %v633
  %v669 = vpop.f32.mrb[0].mxu0
  %v670 = vadd.f32 0.0, %v669
  %v671 = vpop.f32.mrb[0].mxu0
  %v672 = vpop.f32.mrb[0].mxu0
  %v673 = vpop.f32.mrb[0].mxu0
  %674 = vdwg.mxu0
  %676 = vrot.lane.b32.xlu0 %v627, 64
  %v677 = vpop.permute.xlu0 %676
  %v679 = vsel %vm167, %v677, 0
  %681 = vmatprep.subr.bf16.mxu0 0
  %682 = vmatpush1.bf16.msra.mxu0 %v300
  %683 = vmatprep.subr.bf16.mxu0 0
  %684 = vmatpush1.bf16.msra.mxu0 %v301
  %685 = vmatprep.subr.bf16.mxu0 0
  %686 = vmatpush1.bf16.msra.mxu0 0
  %687 = vmatprep.subr.bf16.mxu0 0
  %688 = vmatpush1.bf16.msra.mxu0 0
  %689 = vmatprep.subr.bf16.mxu0 0
  %690 = vmatpush1.bf16.msra.mxu0 0
  %691 = vmatprep.subr.bf16.mxu0 0
  %692 = vmatpush1.bf16.msra.mxu0 0
  %693 = vmatprep.subr.bf16.mxu0 0
  %694 = vmatpush1.bf16.msra.mxu0 0
  %695 = vmatprep.subr.bf16.mxu0 0
  %696 = vmatpush1.bf16.msra.mxu0 0
  %697 = vmatprep.subr.bf16.mxu0 0
  %698 = vmatpush1.bf16.msra.mxu0 0
  %699 = vmatprep.subr.bf16.mxu0 0
  %700 = vmatpush1.bf16.msra.mxu0 0
  %701 = vmatprep.subr.bf16.mxu0 0
  %702 = vmatpush1.bf16.msra.mxu0 0
  %703 = vmatprep.subr.bf16.mxu0 0
  %704 = vmatpush1.bf16.msra.mxu0 0
  %705 = vmatprep.subr.bf16.mxu0 0
  %706 = vmatpush1.bf16.msra.mxu0 0
  %707 = vmatprep.subr.bf16.mxu0 0
  %708 = vmatpush1.bf16.msra.mxu0 0
  %709 = vmatprep.subr.bf16.mxu0 0
  %710 = vmatpush1.bf16.msra.mxu0 0
  %711 = vmatprep.subr.bf16.mxu0 0
  %712 = vmatpush1.bf16.msra.mxu0 0
  %713 = vmatprep.mubr.bf16.mxu0 0
  %714 = vmatmul.mubr.bf16.gmra.mrb[0].mxu0 %v679
  %v715 = vpop.f32.mrb[0].mxu0
  %v716 = vadd.f32 %v670, %v715
  %v717 = vpop.f32.mrb[0].mxu0
  %v718 = vpop.f32.mrb[0].mxu0
  %v719 = vpop.f32.mrb[0].mxu0
  %720 = vdwg.mxu0
  %v721 = vadd.f32 %v716, %v351
  %v722 = vxor.u32 %v721, 2147483648
  %v723 = vmul.f32 %v722, 1.442695
  %v724 = vpow.pop %v723
  %v725 = vadd.f32 %v724, 1.0
  %v726 = vrcp.pop %v725
  %v727 = vmul.f32 1.0, %v726
  %v728 = vtanh.pop %v721
  %v729 = vmul.f32 %v727, %v555
  %731 = vrot.lane.b32.xlu0 %v728, 32
  %v732 = vpop.permute.xlu0 %731
  %v734 = vmul.f32 %v727, %v732
  %736 = vrot.lane.b32.xlu0 %v734, 32
  %v737 = vpop.permute.xlu0 %736
  %v739 = vadd.f32 %v729, %v737
  %v740 = vtanh.pop %v739
  %742 = vrot.lane.b32.xlu0 %v740, 32
  %v743 = vpop.permute.xlu0 %742
  %v745 = vmul.f32 %v727, %v743
  %746 = vmatprep.subr.bf16.mxu0 0
  %747 = vmatpush1.bf16.msra.mxu0 %v163
  %748 = vmatprep.subr.bf16.mxu0 0
  %749 = vmatpush1.bf16.msra.mxu0 %v164
  %750 = vmatprep.subr.bf16.mxu0 0
  %751 = vmatpush1.bf16.msra.mxu0 0
  %752 = vmatprep.subr.bf16.mxu0 0
  %753 = vmatpush1.bf16.msra.mxu0 0
  %754 = vmatprep.subr.bf16.mxu0 0
  %755 = vmatpush1.bf16.msra.mxu0 0
  %756 = vmatprep.subr.bf16.mxu0 0
  %757 = vmatpush1.bf16.msra.mxu0 0
  %758 = vmatprep.subr.bf16.mxu0 0
  %759 = vmatpush1.bf16.msra.mxu0 0
  %760 = vmatprep.subr.bf16.mxu0 0
  %761 = vmatpush1.bf16.msra.mxu0 0
  %762 = vmatprep.subr.bf16.mxu0 0
  %763 = vmatpush1.bf16.msra.mxu0 0
  %764 = vmatprep.subr.bf16.mxu0 0
  %765 = vmatpush1.bf16.msra.mxu0 0
  %766 = vmatprep.subr.bf16.mxu0 0
  %767 = vmatpush1.bf16.msra.mxu0 0
  %768 = vmatprep.subr.bf16.mxu0 0
  %769 = vmatpush1.bf16.msra.mxu0 0
  %770 = vmatprep.subr.bf16.mxu0 0
  %771 = vmatpush1.bf16.msra.mxu0 0
  %772 = vmatprep.subr.bf16.mxu0 0
  %773 = vmatpush1.bf16.msra.mxu0 0
  %774 = vmatprep.subr.bf16.mxu0 0
  %775 = vmatpush1.bf16.msra.mxu0 0
  %776 = vmatprep.subr.bf16.mxu0 0
  %777 = vmatpush1.bf16.msra.mxu0 0
  %778 = vmatprep.mubr.bf16.mxu0 0
  %779 = vmatmul.mubr.bf16.gmra.mrb[0].mxu0 %v679
  %v780 = vpop.f32.mrb[0].mxu0
  %v781 = vadd.f32 0.0, %v780
  %v782 = vpop.f32.mrb[0].mxu0
  %v783 = vpop.f32.mrb[0].mxu0
  %v784 = vpop.f32.mrb[0].mxu0
  %785 = vdwg.mxu0
  %v786 = vadd.f32 %v118, %v781
  %v787 = vxor.u32 %v786, 2147483648
  %v788 = vmul.f32 %v787, 1.442695
  %v789 = vpow.pop %v788
  %v790 = vadd.f32 %v789, 1.0
  %v791 = vrcp.pop %v790
  %v792 = vmul.f32 1.0, %v791
  %v793 = vtanh.pop %v786
  %v794 = vmul.f32 %v792, %v620
  %796 = vrot.lane.b32.xlu0 %v793, 32
  %v797 = vpop.permute.xlu0 %796
  %v799 = vmul.f32 %v792, %v797
  %801 = vrot.lane.b32.xlu0 %v799, 32
  %v802 = vpop.permute.xlu0 %801
  %v804 = vadd.f32 %v794, %v802
  %v805 = vtanh.pop %v804
  %807 = vrot.lane.b32.xlu0 %v805, 32
  %v808 = vpop.permute.xlu0 %807
  %v810 = vmul.f32 %v792, %v808
  %v811 = vpack.c.bf16 %v810, %v810
  %v812 = vpack.c.bf16 %v745, %v745
  %814 = vrot.lane.b32.xlu0 %v812, 64
  %v815 = vpop.permute.xlu0 %814
  %v817 = vsel %vm167, %v815, 0
  %819 = vmatprep.subr.bf16.mxu0 0
  %820 = vmatpush1.bf16.msra.mxu0 %v245
  %821 = vmatprep.subr.bf16.mxu0 0
  %822 = vmatpush1.bf16.msra.mxu0 %v246
  %823 = vmatprep.subr.bf16.mxu0 0
  %824 = vmatpush1.bf16.msra.mxu0 0
  %825 = vmatprep.subr.bf16.mxu0 0
  %826 = vmatpush1.bf16.msra.mxu0 0
  %827 = vmatprep.subr.bf16.mxu0 0
  %828 = vmatpush1.bf16.msra.mxu0 0
  %829 = vmatprep.subr.bf16.mxu0 0
  %830 = vmatpush1.bf16.msra.mxu0 0
  %831 = vmatprep.subr.bf16.mxu0 0
  %832 = vmatpush1.bf16.msra.mxu0 0
  %833 = vmatprep.subr.bf16.mxu0 0
  %834 = vmatpush1.bf16.msra.mxu0 0
  %835 = vmatprep.subr.bf16.mxu0 0
  %836 = vmatpush1.bf16.msra.mxu0 0
  %837 = vmatprep.subr.bf16.mxu0 0
  %838 = vmatpush1.bf16.msra.mxu0 0
  %839 = vmatprep.subr.bf16.mxu0 0
  %840 = vmatpush1.bf16.msra.mxu0 0
  %841 = vmatprep.subr.bf16.mxu0 0
  %842 = vmatpush1.bf16.msra.mxu0 0
  %843 = vmatprep.subr.bf16.mxu0 0
  %844 = vmatpush1.bf16.msra.mxu0 0
  %845 = vmatprep.subr.bf16.mxu0 0
  %846 = vmatpush1.bf16.msra.mxu0 0
  %847 = vmatprep.subr.bf16.mxu0 0
  %848 = vmatpush1.bf16.msra.mxu0 0
  %849 = vmatprep.subr.bf16.mxu0 0
  %850 = vmatpush1.bf16.msra.mxu0 0
  %851 = vmatprep.mubr.bf16.mxu0 0
  %852 = vmatmul.mubr.bf16.gmra.mrb[0].mxu0 %v817
  %v853 = vpop.f32.mrb[0].mxu0
  %v854 = vadd.f32 0.0, %v853
  %v855 = vpop.f32.mrb[0].mxu0
  %v856 = vpop.f32.mrb[0].mxu0
  %v857 = vpop.f32.mrb[0].mxu0
  %858 = vdwg.mxu0
  %860 = vrot.lane.b32.xlu0 %v811, 64
  %v861 = vpop.permute.xlu0 %860
  %v863 = vsel %vm167, %v861, 0
  %865 = vmatprep.subr.bf16.mxu0 0
  %866 = vmatpush1.bf16.msra.mxu0 %v300
  %867 = vmatprep.subr.bf16.mxu0 0
  %868 = vmatpush1.bf16.msra.mxu0 %v301
  %869 = vmatprep.subr.bf16.mxu0 0
  %870 = vmatpush1.bf16.msra.mxu0 0
  %871 = vmatprep.subr.bf16.mxu0 0
  %872 = vmatpush1.bf16.msra.mxu0 0
  %873 = vmatprep.subr.bf16.mxu0 0
  %874 = vmatpush1.bf16.msra.mxu0 0
  %875 = vmatprep.subr.bf16.mxu0 0
  %876 = vmatpush1.bf16.msra.mxu0 0
  %877 = vmatprep.subr.bf16.mxu0 0
  %878 = vmatpush1.bf16.msra.mxu0 0
  %879 = vmatprep.subr.bf16.mxu0 0
  %880 = vmatpush1.bf16.msra.mxu0 0
  %881 = vmatprep.subr.bf16.mxu0 0
  %882 = vmatpush1.bf16.msra.mxu0 0
  %883 = vmatprep.subr.bf16.mxu0 0
  %884 = vmatpush1.bf16.msra.mxu0 0
  %885 = vmatprep.subr.bf16.mxu0 0
  %886 = vmatpush1.bf16.msra.mxu0 0
  %887 = vmatprep.subr.bf16.mxu0 0
  %888 = vmatpush1.bf16.msra.mxu0 0
  %889 = vmatprep.subr.bf16.mxu0 0
  %890 = vmatpush1.bf16.msra.mxu0 0
  %891 = vmatprep.subr.bf16.mxu0 0
  %892 = vmatpush1.bf16.msra.mxu0 0
  %893 = vmatprep.subr.bf16.mxu0 0
  %894 = vmatpush1.bf16.msra.mxu0 0
  %895 = vmatprep.subr.bf16.mxu0 0
  %896 = vmatpush1.bf16.msra.mxu0 0
  %897 = vmatprep.mubr.bf16.mxu0 0
  %898 = vmatmul.mubr.bf16.gmra.mrb[0].mxu0 %v863
  %v899 = vpop.f32.mrb[0].mxu0
  %v900 = vadd.f32 %v854, %v899
  %v901 = vpop.f32.mrb[0].mxu0
  %v902 = vpop.f32.mrb[0].mxu0
  %v903 = vpop.f32.mrb[0].mxu0
  %904 = vdwg.mxu0
  %v905 = vadd.f32 %v900, %v351
  %v906 = vxor.u32 %v905, 2147483648
  %v907 = vmul.f32 %v906, 1.442695
  %v908 = vpow.pop %v907
  %v909 = vadd.f32 %v908, 1.0
  %v910 = vrcp.pop %v909
  %v911 = vmul.f32 1.0, %v910
  %v912 = vtanh.pop %v905
  %v913 = vmul.f32 %v911, %v739
  %915 = vrot.lane.b32.xlu0 %v912, 32
  %v916 = vpop.permute.xlu0 %915
  %v918 = vmul.f32 %v911, %v916
  %920 = vrot.lane.b32.xlu0 %v918, 32
  %v921 = vpop.permute.xlu0 %920
  %v923 = vadd.f32 %v913, %v921
  %v924 = vtanh.pop %v923
  %926 = vrot.lane.b32.xlu0 %v924, 32
  %v927 = vpop.permute.xlu0 %926
  %v929 = vmul.f32 %v911, %v927
  %930 = vmatprep.subr.bf16.mxu0 0
  %931 = vmatpush1.bf16.msra.mxu0 %v163
  %932 = vmatprep.subr.bf16.mxu0 0
  %933 = vmatpush1.bf16.msra.mxu0 %v164
  %934 = vmatprep.subr.bf16.mxu0 0
  %935 = vmatpush1.bf16.msra.mxu0 0
  %936 = vmatprep.subr.bf16.mxu0 0
  %937 = vmatpush1.bf16.msra.mxu0 0
  %938 = vmatprep.subr.bf16.mxu0 0
  %939 = vmatpush1.bf16.msra.mxu0 0
  %940 = vmatprep.subr.bf16.mxu0 0
  %941 = vmatpush1.bf16.msra.mxu0 0
  %942 = vmatprep.subr.bf16.mxu0 0
  %943 = vmatpush1.bf16.msra.mxu0 0
  %944 = vmatprep.subr.bf16.mxu0 0
  %945 = vmatpush1.bf16.msra.mxu0 0
  %946 = vmatprep.subr.bf16.mxu0 0
  %947 = vmatpush1.bf16.msra.mxu0 0
  %948 = vmatprep.subr.bf16.mxu0 0
  %949 = vmatpush1.bf16.msra.mxu0 0
  %950 = vmatprep.subr.bf16.mxu0 0
  %951 = vmatpush1.bf16.msra.mxu0 0
  %952 = vmatprep.subr.bf16.mxu0 0
  %953 = vmatpush1.bf16.msra.mxu0 0
  %954 = vmatprep.subr.bf16.mxu0 0
  %955 = vmatpush1.bf16.msra.mxu0 0
  %956 = vmatprep.subr.bf16.mxu0 0
  %957 = vmatpush1.bf16.msra.mxu0 0
  %958 = vmatprep.subr.bf16.mxu0 0
  %959 = vmatpush1.bf16.msra.mxu0 0
  %960 = vmatprep.subr.bf16.mxu0 0
  %961 = vmatpush1.bf16.msra.mxu0 0
  %962 = vmatprep.mubr.bf16.mxu0 0
  %963 = vmatmul.mubr.bf16.gmra.mrb[0].mxu0 %v863
  %v964 = vpop.f32.mrb[0].mxu0
  %v965 = vadd.f32 0.0, %v964
  %v966 = vpop.f32.mrb[0].mxu0
  %v967 = vpop.f32.mrb[0].mxu0
  %v968 = vpop.f32.mrb[0].mxu0
  %969 = vdwg.mxu0
  %v970 = vadd.f32 %v123, %v965
  %v971 = vxor.u32 %v970, 2147483648
  %v972 = vmul.f32 %v971, 1.442695
  %v973 = vpow.pop %v972
  %v974 = vadd.f32 %v973, 1.0
  %v975 = vrcp.pop %v974
  %v976 = vmul.f32 1.0, %v975
  %v977 = vtanh.pop %v970
  %v978 = vmul.f32 %v976, %v804
  %980 = vrot.lane.b32.xlu0 %v977, 32
  %v981 = vpop.permute.xlu0 %980
  %v983 = vmul.f32 %v976, %v981
  %985 = vrot.lane.b32.xlu0 %v983, 32
  %v986 = vpop.permute.xlu0 %985
  %v988 = vadd.f32 %v978, %v986
  %v989 = vtanh.pop %v988
  %991 = vrot.lane.b32.xlu0 %v989, 32
  %v992 = vpop.permute.xlu0 %991
  %v994 = vmul.f32 %v976, %v992
  %v995 = vpack.c.bf16 %v994, %v994
  %v996 = vpack.c.bf16 %v929, %v929
  %998 = vrot.lane.b32.xlu0 %v996, 64
  %v999 = vpop.permute.xlu0 %998
  %v1001 = vsel %vm167, %v999, 0
  %1003 = vmatprep.subr.bf16.mxu0 0
  %1004 = vmatpush1.bf16.msra.mxu0 %v245
  %1005 = vmatprep.subr.bf16.mxu0 0
  %1006 = vmatpush1.bf16.msra.mxu0 %v246
  %1007 = vmatprep.subr.bf16.mxu0 0
  %1008 = vmatpush1.bf16.msra.mxu0 0
  %1009 = vmatprep.subr.bf16.mxu0 0
  %1010 = vmatpush1.bf16.msra.mxu0 0
  %1011 = vmatprep.subr.bf16.mxu0 0
  %1012 = vmatpush1.bf16.msra.mxu0 0
  %1013 = vmatprep.subr.bf16.mxu0 0
  %1014 = vmatpush1.bf16.msra.mxu0 0
  %1015 = vmatprep.subr.bf16.mxu0 0
  %1016 = vmatpush1.bf16.msra.mxu0 0
  %1017 = vmatprep.subr.bf16.mxu0 0
  %1018 = vmatpush1.bf16.msra.mxu0 0
  %1019 = vmatprep.subr.bf16.mxu0 0
  %1020 = vmatpush1.bf16.msra.mxu0 0
  %1021 = vmatprep.subr.bf16.mxu0 0
  %1022 = vmatpush1.bf16.msra.mxu0 0
  %1023 = vmatprep.subr.bf16.mxu0 0
  %1024 = vmatpush1.bf16.msra.mxu0 0
  %1025 = vmatprep.subr.bf16.mxu0 0
  %1026 = vmatpush1.bf16.msra.mxu0 0
  %1027 = vmatprep.subr.bf16.mxu0 0
  %1028 = vmatpush1.bf16.msra.mxu0 0
  %1029 = vmatprep.subr.bf16.mxu0 0
  %1030 = vmatpush1.bf16.msra.mxu0 0
  %1031 = vmatprep.subr.bf16.mxu0 0
  %1032 = vmatpush1.bf16.msra.mxu0 0
  %1033 = vmatprep.subr.bf16.mxu0 0
  %1034 = vmatpush1.bf16.msra.mxu0 0
  %1035 = vmatprep.mubr.bf16.mxu0 0
  %1036 = vmatmul.mubr.bf16.gmra.mrb[0].mxu0 %v1001
  %v1037 = vpop.f32.mrb[0].mxu0
  %v1038 = vadd.f32 0.0, %v1037
  %v1039 = vpop.f32.mrb[0].mxu0
  %v1040 = vpop.f32.mrb[0].mxu0
  %v1041 = vpop.f32.mrb[0].mxu0
  %1042 = vdwg.mxu0
  %1044 = vrot.lane.b32.xlu0 %v995, 64
  %v1045 = vpop.permute.xlu0 %1044
  %v1047 = vsel %vm167, %v1045, 0
  %1049 = vmatprep.subr.bf16.mxu0 0
  %1050 = vmatpush1.bf16.msra.mxu0 %v300
  %1051 = vmatprep.subr.bf16.mxu0 0
  %1052 = vmatpush1.bf16.msra.mxu0 %v301
  %1053 = vmatprep.subr.bf16.mxu0 0
  %1054 = vmatpush1.bf16.msra.mxu0 0
  %1055 = vmatprep.subr.bf16.mxu0 0
  %1056 = vmatpush1.bf16.msra.mxu0 0
  %1057 = vmatprep.subr.bf16.mxu0 0
  %1058 = vmatpush1.bf16.msra.mxu0 0
  %1059 = vmatprep.subr.bf16.mxu0 0
  %1060 = vmatpush1.bf16.msra.mxu0 0
  %1061 = vmatprep.subr.bf16.mxu0 0
  %1062 = vmatpush1.bf16.msra.mxu0 0
  %1063 = vmatprep.subr.bf16.mxu0 0
  %1064 = vmatpush1.bf16.msra.mxu0 0
  %1065 = vmatprep.subr.bf16.mxu0 0
  %1066 = vmatpush1.bf16.msra.mxu0 0
  %1067 = vmatprep.subr.bf16.mxu0 0
  %1068 = vmatpush1.bf16.msra.mxu0 0
  %1069 = vmatprep.subr.bf16.mxu0 0
  %1070 = vmatpush1.bf16.msra.mxu0 0
  %1071 = vmatprep.subr.bf16.mxu0 0
  %1072 = vmatpush1.bf16.msra.mxu0 0
  %1073 = vmatprep.subr.bf16.mxu0 0
  %1074 = vmatpush1.bf16.msra.mxu0 0
  %1075 = vmatprep.subr.bf16.mxu0 0
  %1076 = vmatpush1.bf16.msra.mxu0 0
  %1077 = vmatprep.subr.bf16.mxu0 0
  %1078 = vmatpush1.bf16.msra.mxu0 0
  %1079 = vmatprep.subr.bf16.mxu0 0
  %1080 = vmatpush1.bf16.msra.mxu0 0
  %1081 = vmatprep.mubr.bf16.mxu0 0
  %1082 = vmatmul.mubr.bf16.gmra.mrb[0].mxu0 %v1047
  %v1083 = vpop.f32.mrb[0].mxu0
  %v1084 = vadd.f32 %v1038, %v1083
  %v1085 = vpop.f32.mrb[0].mxu0
  %v1086 = vpop.f32.mrb[0].mxu0
  %v1087 = vpop.f32.mrb[0].mxu0
  %1088 = vdwg.mxu0
  %v1089 = vadd.f32 %v1084, %v351
  %v1090 = vxor.u32 %v1089, 2147483648
  %v1091 = vmul.f32 %v1090, 1.442695
  %v1092 = vpow.pop %v1091
  %v1093 = vadd.f32 %v1092, 1.0
  %v1094 = vrcp.pop %v1093
  %v1095 = vmul.f32 1.0, %v1094
  %v1096 = vtanh.pop %v1089
  %v1097 = vmul.f32 %v1095, %v923
  %1099 = vrot.lane.b32.xlu0 %v1096, 32
  %v1100 = vpop.permute.xlu0 %1099
  %v1102 = vmul.f32 %v1095, %v1100
  %1104 = vrot.lane.b32.xlu0 %v1102, 32
  %v1105 = vpop.permute.xlu0 %1104
  %v1107 = vadd.f32 %v1097, %v1105
  %v1108 = vtanh.pop %v1107
  %1110 = vrot.lane.b32.xlu0 %v1108, 32
  %v1111 = vpop.permute.xlu0 %1110
  %v1113 = vmul.f32 %v1095, %v1111
  %1114 = vmatprep.subr.bf16.mxu0 0
  %1115 = vmatpush1.bf16.msra.mxu0 %v163
  %1116 = vmatprep.subr.bf16.mxu0 0
  %1117 = vmatpush1.bf16.msra.mxu0 %v164
  %1118 = vmatprep.subr.bf16.mxu0 0
  %1119 = vmatpush1.bf16.msra.mxu0 0
  %1120 = vmatprep.subr.bf16.mxu0 0
  %1121 = vmatpush1.bf16.msra.mxu0 0
  %1122 = vmatprep.subr.bf16.mxu0 0
  %1123 = vmatpush1.bf16.msra.mxu0 0
  %1124 = vmatprep.subr.bf16.mxu0 0
  %1125 = vmatpush1.bf16.msra.mxu0 0
  %1126 = vmatprep.subr.bf16.mxu0 0
  %1127 = vmatpush1.bf16.msra.mxu0 0
  %1128 = vmatprep.subr.bf16.mxu0 0
  %1129 = vmatpush1.bf16.msra.mxu0 0
  %1130 = vmatprep.subr.bf16.mxu0 0
  %1131 = vmatpush1.bf16.msra.mxu0 0
  %1132 = vmatprep.subr.bf16.mxu0 0
  %1133 = vmatpush1.bf16.msra.mxu0 0
  %1134 = vmatprep.subr.bf16.mxu0 0
  %1135 = vmatpush1.bf16.msra.mxu0 0
  %1136 = vmatprep.subr.bf16.mxu0 0
  %1137 = vmatpush1.bf16.msra.mxu0 0
  %1138 = vmatprep.subr.bf16.mxu0 0
  %1139 = vmatpush1.bf16.msra.mxu0 0
  %1140 = vmatprep.subr.bf16.mxu0 0
  %1141 = vmatpush1.bf16.msra.mxu0 0
  %1142 = vmatprep.subr.bf16.mxu0 0
  %1143 = vmatpush1.bf16.msra.mxu0 0
  %1144 = vmatprep.subr.bf16.mxu0 0
  %1145 = vmatpush1.bf16.msra.mxu0 0
  %1146 = vmatprep.mubr.bf16.mxu0 0
  %1147 = vmatmul.mubr.bf16.gmra.mrb[0].mxu0 %v1047
  %v1148 = vpop.f32.mrb[0].mxu0
  %v1149 = vadd.f32 0.0, %v1148
  %v1150 = vpop.f32.mrb[0].mxu0
  %v1151 = vpop.f32.mrb[0].mxu0
  %v1152 = vpop.f32.mrb[0].mxu0
  %1153 = vdwg.mxu0
  %v1154 = vadd.f32 %v126, %v1149
  %v1155 = vxor.u32 %v1154, 2147483648
  %v1156 = vmul.f32 %v1155, 1.442695
  %v1157 = vpow.pop %v1156
  %v1158 = vadd.f32 %v1157, 1.0
  %v1159 = vrcp.pop %v1158
  %v1160 = vmul.f32 1.0, %v1159
  %v1161 = vtanh.pop %v1154
  %v1162 = vmul.f32 %v1160, %v988
  %1164 = vrot.lane.b32.xlu0 %v1161, 32
  %v1165 = vpop.permute.xlu0 %1164
  %v1167 = vmul.f32 %v1160, %v1165
  %1169 = vrot.lane.b32.xlu0 %v1167, 32
  %v1170 = vpop.permute.xlu0 %1169
  %v1172 = vadd.f32 %v1162, %v1170
  %v1173 = vtanh.pop %v1172
  %1175 = vrot.lane.b32.xlu0 %v1173, 32
  %v1176 = vpop.permute.xlu0 %1175
  %v1178 = vmul.f32 %v1160, %v1176
  %v1179 = vpack.c.bf16 %v1178, %v1178
  %v1180 = vpack.c.bf16 %v1113, %v1113
  %1182 = vrot.lane.b32.xlu0 %v1180, 64
  %v1183 = vpop.permute.xlu0 %1182
  %v1185 = vsel %vm167, %v1183, 0
  %1187 = vmatprep.subr.bf16.mxu0 0
  %1188 = vmatpush1.bf16.msra.mxu0 %v245
  %1189 = vmatprep.subr.bf16.mxu0 0
  %1190 = vmatpush1.bf16.msra.mxu0 %v246
  %1191 = vmatprep.subr.bf16.mxu0 0
  %1192 = vmatpush1.bf16.msra.mxu0 0
  %1193 = vmatprep.subr.bf16.mxu0 0
  %1194 = vmatpush1.bf16.msra.mxu0 0
  %1195 = vmatprep.subr.bf16.mxu0 0
  %1196 = vmatpush1.bf16.msra.mxu0 0
  %1197 = vmatprep.subr.bf16.mxu0 0
  %1198 = vmatpush1.bf16.msra.mxu0 0
  %1199 = vmatprep.subr.bf16.mxu0 0
  %1200 = vmatpush1.bf16.msra.mxu0 0
  %1201 = vmatprep.subr.bf16.mxu0 0
  %1202 = vmatpush1.bf16.msra.mxu0 0
  %1203 = vmatprep.subr.bf16.mxu0 0
  %1204 = vmatpush1.bf16.msra.mxu0 0
  %1205 = vmatprep.subr.bf16.mxu0 0
  %1206 = vmatpush1.bf16.msra.mxu0 0
  %1207 = vmatprep.subr.bf16.mxu0 0
  %1208 = vmatpush1.bf16.msra.mxu0 0
  %1209 = vmatprep.subr.bf16.mxu0 0
  %1210 = vmatpush1.bf16.msra.mxu0 0
  %1211 = vmatprep.subr.bf16.mxu0 0
  %1212 = vmatpush1.bf16.msra.mxu0 0
  %1213 = vmatprep.subr.bf16.mxu0 0
  %1214 = vmatpush1.bf16.msra.mxu0 0
  %1215 = vmatprep.subr.bf16.mxu0 0
  %1216 = vmatpush1.bf16.msra.mxu0 0
  %1217 = vmatprep.subr.bf16.mxu0 0
  %1218 = vmatpush1.bf16.msra.mxu0 0
  %1219 = vmatprep.mubr.bf16.mxu0 0
  %1220 = vmatmul.mubr.bf16.gmra.mrb[0].mxu0 %v1185
  %v1221 = vpop.f32.mrb[0].mxu0
  %v1222 = vadd.f32 0.0, %v1221
  %v1223 = vpop.f32.mrb[0].mxu0
  %v1224 = vpop.f32.mrb[0].mxu0
  %v1225 = vpop.f32.mrb[0].mxu0
  %1226 = vdwg.mxu0
  %1228 = vrot.lane.b32.xlu0 %v1179, 64
  %v1229 = vpop.permute.xlu0 %1228
  %v1231 = vsel %vm167, %v1229, 0
  %1233 = vmatprep.subr.bf16.mxu0 0
  %1234 = vmatpush1.bf16.msra.mxu0 %v300
  %1235 = vmatprep.subr.bf16.mxu0 0
  %1236 = vmatpush1.bf16.msra.mxu0 %v301
  %1237 = vmatprep.subr.bf16.mxu0 0
  %1238 = vmatpush1.bf16.msra.mxu0 0
  %1239 = vmatprep.subr.bf16.mxu0 0
  %1240 = vmatpush1.bf16.msra.mxu0 0
  %1241 = vmatprep.subr.bf16.mxu0 0
  %1242 = vmatpush1.bf16.msra.mxu0 0
  %1243 = vmatprep.subr.bf16.mxu0 0
  %1244 = vmatpush1.bf16.msra.mxu0 0
  %1245 = vmatprep.subr.bf16.mxu0 0
  %1246 = vmatpush1.bf16.msra.mxu0 0
  %1247 = vmatprep.subr.bf16.mxu0 0
  %1248 = vmatpush1.bf16.msra.mxu0 0
  %1249 = vmatprep.subr.bf16.mxu0 0
  %1250 = vmatpush1.bf16.msra.mxu0 0
  %1251 = vmatprep.subr.bf16.mxu0 0
  %1252 = vmatpush1.bf16.msra.mxu0 0
  %1253 = vmatprep.subr.bf16.mxu0 0
  %1254 = vmatpush1.bf16.msra.mxu0 0
  %1255 = vmatprep.subr.bf16.mxu0 0
  %1256 = vmatpush1.bf16.msra.mxu0 0
  %1257 = vmatprep.subr.bf16.mxu0 0
  %1258 = vmatpush1.bf16.msra.mxu0 0
  %1259 = vmatprep.subr.bf16.mxu0 0
  %1260 = vmatpush1.bf16.msra.mxu0 0
  %1261 = vmatprep.subr.bf16.mxu0 0
  %1262 = vmatpush1.bf16.msra.mxu0 0
  %1263 = vmatprep.subr.bf16.mxu0 0
  %1264 = vmatpush1.bf16.msra.mxu0 0
  %1265 = vmatprep.mubr.bf16.mxu0 0
  %1266 = vmatmul.mubr.bf16.gmra.mrb[0].mxu0 %v1231
  %v1267 = vpop.f32.mrb[0].mxu0
  %v1268 = vadd.f32 %v1222, %v1267
  %v1269 = vpop.f32.mrb[0].mxu0
  %v1270 = vpop.f32.mrb[0].mxu0
  %v1271 = vpop.f32.mrb[0].mxu0
  %1272 = vdwg.mxu0
  %v1273 = vadd.f32 %v1268, %v351
  %v1274 = vxor.u32 %v1273, 2147483648
  %v1275 = vmul.f32 %v1274, 1.442695
  %v1276 = vpow.pop %v1275
  %v1277 = vadd.f32 %v1276, 1.0
  %v1278 = vrcp.pop %v1277
  %v1279 = vmul.f32 1.0, %v1278
  %v1280 = vtanh.pop %v1273
  %v1281 = vmul.f32 %v1279, %v1107
  %1283 = vrot.lane.b32.xlu0 %v1280, 32
  %v1284 = vpop.permute.xlu0 %1283
  %v1286 = vmul.f32 %v1279, %v1284
  %1288 = vrot.lane.b32.xlu0 %v1286, 32
  %v1289 = vpop.permute.xlu0 %1288
  %v1291 = vadd.f32 %v1281, %v1289
  %v1292 = vtanh.pop %v1291
  %1294 = vrot.lane.b32.xlu0 %v1292, 32
  %v1295 = vpop.permute.xlu0 %1294
  %v1297 = vmul.f32 %v1279, %v1295
  %1298 = vmatprep.subr.bf16.mxu0 0
  %1299 = vmatpush1.bf16.msra.mxu0 %v163
  %1300 = vmatprep.subr.bf16.mxu0 0
  %1301 = vmatpush1.bf16.msra.mxu0 %v164
  %1302 = vmatprep.subr.bf16.mxu0 0
  %1303 = vmatpush1.bf16.msra.mxu0 0
  %1304 = vmatprep.subr.bf16.mxu0 0
  %1305 = vmatpush1.bf16.msra.mxu0 0
  %1306 = vmatprep.subr.bf16.mxu0 0
  %1307 = vmatpush1.bf16.msra.mxu0 0
  %1308 = vmatprep.subr.bf16.mxu0 0
  %1309 = vmatpush1.bf16.msra.mxu0 0
  %1310 = vmatprep.subr.bf16.mxu0 0
  %1311 = vmatpush1.bf16.msra.mxu0 0
  %1312 = vmatprep.subr.bf16.mxu0 0
  %1313 = vmatpush1.bf16.msra.mxu0 0
  %1314 = vmatprep.subr.bf16.mxu0 0
  %1315 = vmatpush1.bf16.msra.mxu0 0
  %1316 = vmatprep.subr.bf16.mxu0 0
  %1317 = vmatpush1.bf16.msra.mxu0 0
  %1318 = vmatprep.subr.bf16.mxu0 0
  %1319 = vmatpush1.bf16.msra.mxu0 0
  %1320 = vmatprep.subr.bf16.mxu0 0
  %1321 = vmatpush1.bf16.msra.mxu0 0
  %1322 = vmatprep.subr.bf16.mxu0 0
  %1323 = vmatpush1.bf16.msra.mxu0 0
  %1324 = vmatprep.subr.bf16.mxu0 0
  %1325 = vmatpush1.bf16.msra.mxu0 0
  %1326 = vmatprep.subr.bf16.mxu0 0
  %1327 = vmatpush1.bf16.msra.mxu0 0
  %1328 = vmatprep.subr.bf16.mxu0 0
  %1329 = vmatpush1.bf16.msra.mxu0 0
  %1330 = vmatprep.mubr.bf16.mxu0 0
  %1331 = vmatmul.mubr.bf16.gmra.mrb[0].mxu0 %v1231
  %v1332 = vpop.f32.mrb[0].mxu0
  %v1333 = vadd.f32 0.0, %v1332
  %v1334 = vpop.f32.mrb[0].mxu0
  %v1335 = vpop.f32.mrb[0].mxu0
  %v1336 = vpop.f32.mrb[0].mxu0
  %1337 = vdwg.mxu0
  %v1338 = vadd.f32 %v131, %v1333
  %v1339 = vxor.u32 %v1338, 2147483648
  %v1340 = vmul.f32 %v1339, 1.442695
  %v1341 = vpow.pop %v1340
  %v1342 = vadd.f32 %v1341, 1.0
  %v1343 = vrcp.pop %v1342
  %v1344 = vmul.f32 1.0, %v1343
  %v1345 = vtanh.pop %v1338
  %v1346 = vmul.f32 %v1344, %v1172
  %1348 = vrot.lane.b32.xlu0 %v1345, 32
  %v1349 = vpop.permute.xlu0 %1348
  %v1351 = vmul.f32 %v1344, %v1349
  %1353 = vrot.lane.b32.xlu0 %v1351, 32
  %v1354 = vpop.permute.xlu0 %1353
  %v1356 = vadd.f32 %v1346, %v1354
  %v1357 = vtanh.pop %v1356
  %1359 = vrot.lane.b32.xlu0 %v1357, 32
  %v1360 = vpop.permute.xlu0 %1359
  %v1362 = vmul.f32 %v1344, %v1360
  %v1363 = vpack.c.bf16 %v1362, %v1362
  %v1364 = vpack.c.bf16 %v1297, %v1297
  %1366 = vrot.lane.b32.xlu0 %v1364, 64
  %v1367 = vpop.permute.xlu0 %1366
  %v1369 = vsel %vm167, %v1367, 0
  %1371 = vmatprep.subr.bf16.mxu0 0
  %1372 = vmatpush1.bf16.msra.mxu0 %v245
  %1373 = vmatprep.subr.bf16.mxu0 0
  %1374 = vmatpush1.bf16.msra.mxu0 %v246
  %1375 = vmatprep.subr.bf16.mxu0 0
  %1376 = vmatpush1.bf16.msra.mxu0 0
  %1377 = vmatprep.subr.bf16.mxu0 0
  %1378 = vmatpush1.bf16.msra.mxu0 0
  %1379 = vmatprep.subr.bf16.mxu0 0
  %1380 = vmatpush1.bf16.msra.mxu0 0
  %1381 = vmatprep.subr.bf16.mxu0 0
  %1382 = vmatpush1.bf16.msra.mxu0 0
  %1383 = vmatprep.subr.bf16.mxu0 0
  %1384 = vmatpush1.bf16.msra.mxu0 0
  %1385 = vmatprep.subr.bf16.mxu0 0
  %1386 = vmatpush1.bf16.msra.mxu0 0
  %1387 = vmatprep.subr.bf16.mxu0 0
  %1388 = vmatpush1.bf16.msra.mxu0 0
  %1389 = vmatprep.subr.bf16.mxu0 0
  %1390 = vmatpush1.bf16.msra.mxu0 0
  %1391 = vmatprep.subr.bf16.mxu0 0
  %1392 = vmatpush1.bf16.msra.mxu0 0
  %1393 = vmatprep.subr.bf16.mxu0 0
  %1394 = vmatpush1.bf16.msra.mxu0 0
  %1395 = vmatprep.subr.bf16.mxu0 0
  %1396 = vmatpush1.bf16.msra.mxu0 0
  %1397 = vmatprep.subr.bf16.mxu0 0
  %1398 = vmatpush1.bf16.msra.mxu0 0
  %1399 = vmatprep.subr.bf16.mxu0 0
  %1400 = vmatpush1.bf16.msra.mxu0 0
  %1401 = vmatprep.subr.bf16.mxu0 0
  %1402 = vmatpush1.bf16.msra.mxu0 0
  %1403 = vmatprep.mubr.bf16.mxu0 0
  %1404 = vmatmul.mubr.bf16.gmra.mrb[0].mxu0 %v1369
  %v1405 = vpop.f32.mrb[0].mxu0
  %v1406 = vadd.f32 0.0, %v1405
  %v1407 = vpop.f32.mrb[0].mxu0
  %v1408 = vpop.f32.mrb[0].mxu0
  %v1409 = vpop.f32.mrb[0].mxu0
  %1410 = vdwg.mxu0
  %1412 = vrot.lane.b32.xlu0 %v1363, 64
  %v1413 = vpop.permute.xlu0 %1412
  %v1415 = vsel %vm167, %v1413, 0
  %1417 = vmatprep.subr.bf16.mxu0 0
  %1418 = vmatpush1.bf16.msra.mxu0 %v300
  %1419 = vmatprep.subr.bf16.mxu0 0
  %1420 = vmatpush1.bf16.msra.mxu0 %v301
  %1421 = vmatprep.subr.bf16.mxu0 0
  %1422 = vmatpush1.bf16.msra.mxu0 0
  %1423 = vmatprep.subr.bf16.mxu0 0
  %1424 = vmatpush1.bf16.msra.mxu0 0
  %1425 = vmatprep.subr.bf16.mxu0 0
  %1426 = vmatpush1.bf16.msra.mxu0 0
  %1427 = vmatprep.subr.bf16.mxu0 0
  %1428 = vmatpush1.bf16.msra.mxu0 0
  %1429 = vmatprep.subr.bf16.mxu0 0
  %1430 = vmatpush1.bf16.msra.mxu0 0
  %1431 = vmatprep.subr.bf16.mxu0 0
  %1432 = vmatpush1.bf16.msra.mxu0 0
  %1433 = vmatprep.subr.bf16.mxu0 0
  %1434 = vmatpush1.bf16.msra.mxu0 0
  %1435 = vmatprep.subr.bf16.mxu0 0
  %1436 = vmatpush1.bf16.msra.mxu0 0
  %1437 = vmatprep.subr.bf16.mxu0 0
  %1438 = vmatpush1.bf16.msra.mxu0 0
  %1439 = vmatprep.subr.bf16.mxu0 0
  %1440 = vmatpush1.bf16.msra.mxu0 0
  %1441 = vmatprep.subr.bf16.mxu0 0
  %1442 = vmatpush1.bf16.msra.mxu0 0
  %1443 = vmatprep.subr.bf16.mxu0 0
  %1444 = vmatpush1.bf16.msra.mxu0 0
  %1445 = vmatprep.subr.bf16.mxu0 0
  %1446 = vmatpush1.bf16.msra.mxu0 0
  %1447 = vmatprep.subr.bf16.mxu0 0
  %1448 = vmatpush1.bf16.msra.mxu0 0
  %1449 = vmatprep.mubr.bf16.mxu0 0
  %1450 = vmatmul.mubr.bf16.gmra.mrb[0].mxu0 %v1415
  %v1451 = vpop.f32.mrb[0].mxu0
  %v1452 = vadd.f32 %v1406, %v1451
  %v1453 = vpop.f32.mrb[0].mxu0
  %v1454 = vpop.f32.mrb[0].mxu0
  %v1455 = vpop.f32.mrb[0].mxu0
  %1456 = vdwg.mxu0
  %v1457 = vadd.f32 %v1452, %v351
  %v1458 = vxor.u32 %v1457, 2147483648
  %v1459 = vmul.f32 %v1458, 1.442695
  %v1460 = vpow.pop %v1459
  %v1461 = vadd.f32 %v1460, 1.0
  %v1462 = vrcp.pop %v1461
  %v1463 = vmul.f32 1.0, %v1462
  %v1464 = vtanh.pop %v1457
  %v1465 = vmul.f32 %v1463, %v1291
  %1467 = vrot.lane.b32.xlu0 %v1464, 32
  %v1468 = vpop.permute.xlu0 %1467
  %v1470 = vmul.f32 %v1463, %v1468
  %1472 = vrot.lane.b32.xlu0 %v1470, 32
  %v1473 = vpop.permute.xlu0 %1472
  %v1475 = vadd.f32 %v1465, %v1473
  %v1476 = vtanh.pop %v1475
  %1478 = vrot.lane.b32.xlu0 %v1476, 32
  %v1479 = vpop.permute.xlu0 %1478
  %v1481 = vmul.f32 %v1463, %v1479
  %1482 = vmatprep.subr.bf16.mxu0 0
  %1483 = vmatpush1.bf16.msra.mxu0 %v163
  %1484 = vmatprep.subr.bf16.mxu0 0
  %1485 = vmatpush1.bf16.msra.mxu0 %v164
  %1486 = vmatprep.subr.bf16.mxu0 0
  %1487 = vmatpush1.bf16.msra.mxu0 0
  %1488 = vmatprep.subr.bf16.mxu0 0
  %1489 = vmatpush1.bf16.msra.mxu0 0
  %1490 = vmatprep.subr.bf16.mxu0 0
  %1491 = vmatpush1.bf16.msra.mxu0 0
  %1492 = vmatprep.subr.bf16.mxu0 0
  %1493 = vmatpush1.bf16.msra.mxu0 0
  %1494 = vmatprep.subr.bf16.mxu0 0
  %1495 = vmatpush1.bf16.msra.mxu0 0
  %1496 = vmatprep.subr.bf16.mxu0 0
  %1497 = vmatpush1.bf16.msra.mxu0 0
  %1498 = vmatprep.subr.bf16.mxu0 0
  %1499 = vmatpush1.bf16.msra.mxu0 0
  %1500 = vmatprep.subr.bf16.mxu0 0
  %1501 = vmatpush1.bf16.msra.mxu0 0
  %1502 = vmatprep.subr.bf16.mxu0 0
  %1503 = vmatpush1.bf16.msra.mxu0 0
  %1504 = vmatprep.subr.bf16.mxu0 0
  %1505 = vmatpush1.bf16.msra.mxu0 0
  %1506 = vmatprep.subr.bf16.mxu0 0
  %1507 = vmatpush1.bf16.msra.mxu0 0
  %1508 = vmatprep.subr.bf16.mxu0 0
  %1509 = vmatpush1.bf16.msra.mxu0 0
  %1510 = vmatprep.subr.bf16.mxu0 0
  %1511 = vmatpush1.bf16.msra.mxu0 0
  %1512 = vmatprep.subr.bf16.mxu0 0
  %1513 = vmatpush1.bf16.msra.mxu0 0
  %1514 = vmatprep.mubr.bf16.mxu0 0
  %1515 = vmatmul.mubr.bf16.gmra.mrb[0].mxu0 %v1415
  %v1516 = vpop.f32.mrb[0].mxu0
  %v1517 = vadd.f32 0.0, %v1516
  %v1518 = vpop.f32.mrb[0].mxu0
  %v1519 = vpop.f32.mrb[0].mxu0
  %v1520 = vpop.f32.mrb[0].mxu0
  %1521 = vdwg.mxu0
  %v1522 = vadd.f32 %v134, %v1517
  %v1523 = vxor.u32 %v1522, 2147483648
  %v1524 = vmul.f32 %v1523, 1.442695
  %v1525 = vpow.pop %v1524
  %v1526 = vadd.f32 %v1525, 1.0
  %v1527 = vrcp.pop %v1526
  %v1528 = vmul.f32 1.0, %v1527
  %v1529 = vtanh.pop %v1522
  %v1530 = vmul.f32 %v1528, %v1356
  %1532 = vrot.lane.b32.xlu0 %v1529, 32
  %v1533 = vpop.permute.xlu0 %1532
  %v1535 = vmul.f32 %v1528, %v1533
  %1537 = vrot.lane.b32.xlu0 %v1535, 32
  %v1538 = vpop.permute.xlu0 %1537
  %v1540 = vadd.f32 %v1530, %v1538
  %v1541 = vtanh.pop %v1540
  %1543 = vrot.lane.b32.xlu0 %v1541, 32
  %v1544 = vpop.permute.xlu0 %1543
  %v1546 = vmul.f32 %v1528, %v1544
  %v1547 = vpack.c.bf16 %v1546, %v1546
  %v1548 = vpack.c.bf16 %v1481, %v1481
  %1550 = vrot.lane.b32.xlu0 %v1548, 64
  %v1551 = vpop.permute.xlu0 %1550
  %v1553 = vsel %vm167, %v1551, 0
  %1555 = vmatprep.subr.bf16.mxu0 0
  %1556 = vmatpush1.bf16.msra.mxu0 %v245
  %1557 = vmatprep.subr.bf16.mxu0 0
  %1558 = vmatpush1.bf16.msra.mxu0 %v246
  %1559 = vmatprep.subr.bf16.mxu0 0
  %1560 = vmatpush1.bf16.msra.mxu0 0
  %1561 = vmatprep.subr.bf16.mxu0 0
  %1562 = vmatpush1.bf16.msra.mxu0 0
  %1563 = vmatprep.subr.bf16.mxu0 0
  %1564 = vmatpush1.bf16.msra.mxu0 0
  %1565 = vmatprep.subr.bf16.mxu0 0
  %1566 = vmatpush1.bf16.msra.mxu0 0
  %1567 = vmatprep.subr.bf16.mxu0 0
  %1568 = vmatpush1.bf16.msra.mxu0 0
  %1569 = vmatprep.subr.bf16.mxu0 0
  %1570 = vmatpush1.bf16.msra.mxu0 0
  %1571 = vmatprep.subr.bf16.mxu0 0
  %1572 = vmatpush1.bf16.msra.mxu0 0
  %1573 = vmatprep.subr.bf16.mxu0 0
  %1574 = vmatpush1.bf16.msra.mxu0 0
  %1575 = vmatprep.subr.bf16.mxu0 0
  %1576 = vmatpush1.bf16.msra.mxu0 0
  %1577 = vmatprep.subr.bf16.mxu0 0
  %1578 = vmatpush1.bf16.msra.mxu0 0
  %1579 = vmatprep.subr.bf16.mxu0 0
  %1580 = vmatpush1.bf16.msra.mxu0 0
  %1581 = vmatprep.subr.bf16.mxu0 0
  %1582 = vmatpush1.bf16.msra.mxu0 0
  %1583 = vmatprep.subr.bf16.mxu0 0
  %1584 = vmatpush1.bf16.msra.mxu0 0
  %1585 = vmatprep.subr.bf16.mxu0 0
  %1586 = vmatpush1.bf16.msra.mxu0 0
  %1587 = vmatprep.mubr.bf16.mxu0 0
  %1588 = vmatmul.mubr.bf16.gmra.mrb[0].mxu0 %v1553
  %v1589 = vpop.f32.mrb[0].mxu0
  %v1590 = vadd.f32 0.0, %v1589
  %v1591 = vpop.f32.mrb[0].mxu0
  %v1592 = vpop.f32.mrb[0].mxu0
  %v1593 = vpop.f32.mrb[0].mxu0
  %1594 = vdwg.mxu0
  %1596 = vrot.lane.b32.xlu0 %v1547, 64
  %v1597 = vpop.permute.xlu0 %1596
  %v1599 = vsel %vm167, %v1597, 0
  %1601 = vmatprep.subr.bf16.mxu0 0
  %1602 = vmatpush1.bf16.msra.mxu0 %v300
  %1603 = vmatprep.subr.bf16.mxu0 0
  %1604 = vmatpush1.bf16.msra.mxu0 %v301
  %1605 = vmatprep.subr.bf16.mxu0 0
  %1606 = vmatpush1.bf16.msra.mxu0 0
  %1607 = vmatprep.subr.bf16.mxu0 0
  %1608 = vmatpush1.bf16.msra.mxu0 0
  %1609 = vmatprep.subr.bf16.mxu0 0
  %1610 = vmatpush1.bf16.msra.mxu0 0
  %1611 = vmatprep.subr.bf16.mxu0 0
  %1612 = vmatpush1.bf16.msra.mxu0 0
  %1613 = vmatprep.subr.bf16.mxu0 0
  %1614 = vmatpush1.bf16.msra.mxu0 0
  %1615 = vmatprep.subr.bf16.mxu0 0
  %1616 = vmatpush1.bf16.msra.mxu0 0
  %1617 = vmatprep.subr.bf16.mxu0 0
  %1618 = vmatpush1.bf16.msra.mxu0 0
  %1619 = vmatprep.subr.bf16.mxu0 0
  %1620 = vmatpush1.bf16.msra.mxu0 0
  %1621 = vmatprep.subr.bf16.mxu0 0
  %1622 = vmatpush1.bf16.msra.mxu0 0
  %1623 = vmatprep.subr.bf16.mxu0 0
  %1624 = vmatpush1.bf16.msra.mxu0 0
  %1625 = vmatprep.subr.bf16.mxu0 0
  %1626 = vmatpush1.bf16.msra.mxu0 0
  %1627 = vmatprep.subr.bf16.mxu0 0
  %1628 = vmatpush1.bf16.msra.mxu0 0
  %1629 = vmatprep.subr.bf16.mxu0 0
  %1630 = vmatpush1.bf16.msra.mxu0 0
  %1631 = vmatprep.subr.bf16.mxu0 0
  %1632 = vmatpush1.bf16.msra.mxu0 0
  %1633 = vmatprep.mubr.bf16.mxu0 0
  %1634 = vmatmul.mubr.bf16.gmra.mrb[0].mxu0 %v1599
  %v1635 = vpop.f32.mrb[0].mxu0
  %v1636 = vadd.f32 %v1590, %v1635
  %v1637 = vpop.f32.mrb[0].mxu0
  %v1638 = vpop.f32.mrb[0].mxu0
  %v1639 = vpop.f32.mrb[0].mxu0
  %1640 = vdwg.mxu0
  %v1641 = vadd.f32 %v1636, %v351
  %v1642 = vxor.u32 %v1641, 2147483648
  %v1643 = vmul.f32 %v1642, 1.442695
  %v1644 = vpow.pop %v1643
  %v1645 = vadd.f32 %v1644, 1.0
  %v1646 = vrcp.pop %v1645
  %v1647 = vmul.f32 1.0, %v1646
  %v1648 = vtanh.pop %v1641
  %v1649 = vmul.f32 %v1647, %v1475
  %1651 = vrot.lane.b32.xlu0 %v1648, 32
  %v1652 = vpop.permute.xlu0 %1651
  %v1654 = vmul.f32 %v1647, %v1652
  %1656 = vrot.lane.b32.xlu0 %v1654, 32
  %v1657 = vpop.permute.xlu0 %1656
  %v1659 = vadd.f32 %v1649, %v1657
  %v1660 = vtanh.pop %v1659
  %1662 = vrot.lane.b32.xlu0 %v1660, 32
  %v1663 = vpop.permute.xlu0 %1662
  %v1665 = vmul.f32 %v1647, %v1663
  %v1666 = vpack.c.bf16 %v1665, %v1665
  %v1668 = vlaneseq
  %v1669 = vshrl.u32 %v1668, 7
  %v1670 = vsub.s32 0, %v1669
  %v1671 = vrot.slane %v154, %v1670
  %1674 = vrot.lane.b32.xlu0 %v1666, 64
  %v1675 = vpop.permute.xlu0 %1674
  %v1680 = vunpack.c.l.b16 %v150
  %v1681 = vunpack.c.l.b16 %v151
  %v1682 = vunpack.c.l.b16 %v152
  %v1683 = vunpack.c.l.b16 %v153
  %v1684 = vpack.c.b16 %v1681, %v1680
  %v1685 = vpack.c.b16 %v1683, %v1682
  %v1689 = vsel %vm167, %v1675, 0
  %1691 = vmatprep.subr.bf16.mxu0 0
  %1692 = vmatpush1.bf16.msra.mxu0 %v1684
  %1693 = vmatprep.subr.bf16.mxu0 0
  %1694 = vmatpush1.bf16.msra.mxu0 %v1685
  %1695 = vmatprep.subr.bf16.mxu0 0
  %1696 = vmatpush1.bf16.msra.mxu0 0
  %1697 = vmatprep.subr.bf16.mxu0 0
  %1698 = vmatpush1.bf16.msra.mxu0 0
  %1699 = vmatprep.subr.bf16.mxu0 0
  %1700 = vmatpush1.bf16.msra.mxu0 0
  %1701 = vmatprep.subr.bf16.mxu0 0
  %1702 = vmatpush1.bf16.msra.mxu0 0
  %1703 = vmatprep.subr.bf16.mxu0 0
  %1704 = vmatpush1.bf16.msra.mxu0 0
  %1705 = vmatprep.subr.bf16.mxu0 0
  %1706 = vmatpush1.bf16.msra.mxu0 0
  %1707 = vmatprep.subr.bf16.mxu0 0
  %1708 = vmatpush1.bf16.msra.mxu0 0
  %1709 = vmatprep.subr.bf16.mxu0 0
  %1710 = vmatpush1.bf16.msra.mxu0 0
  %1711 = vmatprep.subr.bf16.mxu0 0
  %1712 = vmatpush1.bf16.msra.mxu0 0
  %1713 = vmatprep.subr.bf16.mxu0 0
  %1714 = vmatpush1.bf16.msra.mxu0 0
  %1715 = vmatprep.subr.bf16.mxu0 0
  %1716 = vmatpush1.bf16.msra.mxu0 0
  %1717 = vmatprep.subr.bf16.mxu0 0
  %1718 = vmatpush1.bf16.msra.mxu0 0
  %1719 = vmatprep.subr.bf16.mxu0 0
  %1720 = vmatpush1.bf16.msra.mxu0 0
  %1721 = vmatprep.subr.bf16.mxu0 0
  %1722 = vmatpush1.bf16.msra.mxu0 0
  %1723 = vmatprep.mubr.bf16.mxu0 0
  %1724 = vmatmul.mubr.bf16.gmra.mrb[0].mxu0 %v1689
  %v1725 = vpop.f32.mrb[0].mxu0
  %v1726 = vadd.f32 %v1671, %v1725
  %v1727 = vpop.f32.mrb[0].mxu0
  %v1728 = vpop.f32.mrb[0].mxu0
  %v1729 = vpop.f32.mrb[0].mxu0
  %1730 = vdwg.mxu0
  %v1731 = vxor.u32 %v1726, 2147483648
  %v1732 = vmul.f32 %v1731, 1.442695
  %v1733 = vpow.pop %v1732
  %v1734 = vadd.f32 %v1733, 1.0
  %v1735 = vrcp.pop %v1734
  %v1736 = vmul.f32 1.0, %v1735
  %vm1737 = vcmask 7168
  %1738 = vst.msk [vmem:[%s9] sm:$0xff] %vm1737, %v1736
  // Predicated region
  $region38: #{tpu_custom_call.1} parent=0 // pred_check
    _
  $region39: #{tpu_custom_call.1} parent=0 // pred_check_branch
    %1740 = sbr.rel (0) target = $region41
  $region40: #{tpu_custom_call.1} parent=0 // pred_region
    _
  $region41: #{tpu_custom_call.1} parent=0 // pred_fallthru
    _
  // Predicated region
  $region42: #{tpu_custom_call.1} parent=0 // pred_check
    _
  $region43: #{tpu_custom_call.1} parent=0 // pred_check_branch
    %1742 = sbr.rel (0) target = $region45
  $region44: #{tpu_custom_call.1} parent=0 // pred_region
    _
  $region45: #{tpu_custom_call.1} parent=0 // pred_fallthru
    _

</llo_original>
